<compile_context>
chip_gen: v7x
topology: tpu7x:2x2x1
jax: 0.10.0
libtpu: 0.0.40
codegen_flags: <defaults>
</compile_context>

<pallas_src>
import functools

import jax
import jax.numpy as jnp
from jax.experimental import pallas as pl
from jax.experimental.pallas import tpu as pltpu

DLIST_HIDDEN = 1024
PLAN_EMB_OUT = 32
PLAN_EMB_IN = 81
Q_EMB = 100
FRAME_EMB = 512
DRNN_IN = 1024 + 2 + Q_EMB + FRAME_EMB                 # 1638
Q_IN_SIZE = 3 * PLAN_EMB_OUT + DLIST_HIDDEN + Q_EMB    # 1220
HEAD_DIMS = (2, 2, 2, 3, 3, 22, 3, 3, 22)


def _round_up(x, m):
    return (x + m - 1) // m * m


def _pick_tile(dim, max_tile, unit):
    """Pick a block size for `dim`.  Returns (tile, padded_dim).

    If dim fits in one tile the whole (unpadded) dim is a single block (legal
    regardless of (8,128) divisibility).  Otherwise pick the largest
    multiple-of-`unit` divisor of dim (no padding); only pad as a last resort.
    """
    if dim <= max_tile:
        return dim, dim
    t = (max_tile // unit) * unit
    while t >= unit:
        if dim % t == 0:
            return t, dim
        t -= unit
    t = (max_tile // unit) * unit
    return t, _round_up(dim, t)


# --------------------------- Pallas kernels ---------------------------------

def _apply_act(r, activation):
    if activation == "relu":
        return jnp.maximum(r, 0.0)
    if activation == "gelu":
        # TODO(synk): torch nn.GELU default is the exact erf form; the tanh
        # approximation is used for a guaranteed Mosaic lowering.
        return jax.nn.gelu(r, approximate=True)
    return r


def _matmul_single_k_kernel(x_ref, w_ref, b_ref, o_ref, *, activation):
    # bf16 operands, f32 MXU accumulation, f32 epilogue.
    r = jnp.dot(x_ref[...], w_ref[...], preferred_element_type=jnp.float32)
    r = r + b_ref[...]
    o_ref[...] = _apply_act(r, activation).astype(o_ref.dtype)


def _matmul_multi_k_kernel(x_ref, w_ref, b_ref, o_ref, *, activation):
    # Accumulate directly into the (f32, k-resident) output block; no scratch.
    k = pl.program_id(2)

    @pl.when(k == 0)
    def _():
        o_ref[...] = jnp.zeros_like(o_ref)

    o_ref[...] += jnp.dot(x_ref[...], w_ref[...],
                          preferred_element_type=jnp.float32)

    @pl.when(k == pl.num_programs(2) - 1)
    def _():
        r = o_ref[...] + b_ref[...]
        o_ref[...] = _apply_act(r, activation).astype(o_ref.dtype)


def pallas_linear(x, w_t, b, activation="none",
                  tm_max=512, tn_max=512, tk_max=2048):
    """act(x @ w_t + b).  x: (M,K), w_t: (K,N), b: (N,).  bf16 in, f32 out."""
    M, K = x.shape
    _, N = w_t.shape
    x = x.astype(jnp.bfloat16)
    w_t = w_t.astype(jnp.bfloat16)
    b2 = b.astype(jnp.float32).reshape(1, N)

    tm, Mp = _pick_tile(M, tm_max, 8)     # second-to-last dims: multiple of 8
    tk, Kp = _pick_tile(K, tk_max, 128)   # K is a last dim of x blocks: 128
    tn, Np = _pick_tile(N, tn_max, 128)   # last dims: multiple of 128

    if Mp != M or Kp != K:
        x = jnp.pad(x, ((0, Mp - M), (0, Kp - K)))
    if Kp != K or Np != N:
        w_t = jnp.pad(w_t, ((0, Kp - K), (0, Np - N)))
    if Np != N:
        b2 = jnp.pad(b2, ((0, 0), (0, Np - N)))

    grid = (Mp // tm, Np // tn, Kp // tk)
    kernel = _matmul_single_k_kernel if grid[2] == 1 else _matmul_multi_k_kernel

    out = pl.pallas_call(
        functools.partial(kernel, activation=activation),
        out_shape=jax.ShapeDtypeStruct((Mp, Np), jnp.float32),
        grid_spec=pltpu.PrefetchScalarGridSpec(
            num_scalar_prefetch=0,
            grid=grid,
            in_specs=[
                pl.BlockSpec((tm, tk), lambda i, j, k: (i, k)),
                pl.BlockSpec((tk, tn), lambda i, j, k: (k, j)),
                pl.BlockSpec((1, tn), lambda i, j, k: (0, j)),
            ],
            out_specs=pl.BlockSpec((tm, tn), lambda i, j, k: (i, j)),
        ),
        compiler_params=pltpu.CompilerParams(
            dimension_semantics=("parallel", "parallel", "arbitrary")),
    )(x, w_t, b2)
    if Mp != M or Np != N:
        out = out[:M, :N]
    return out


def _gru_scan_kernel(xg_ref, whh_t_ref, bhn_ref, out_ref, *, hidden, seq_len):
    """Scan one GRU (PyTorch gate order r,z,n) over time.  xg already contains
    b_ih and the r/z part of b_hh; only the n-gate hidden bias (bhn) is applied
    inside (it is gated by r).  W_hh^T stays resident in VMEM (bf16)."""
    bhn = bhn_ref[...]                                           # (1, H), f32

    def step(t, h):
        xg = xg_ref[pl.ds(t, 1), :]                              # (1, 3H)
        hg = jnp.dot(h.astype(jnp.bfloat16), whh_t_ref[...],
                     preferred_element_type=jnp.float32)         # (1, 3H)
        xr = xg[:, 0:hidden]
        xz = xg[:, hidden:2 * hidden]
        xn = xg[:, 2 * hidden:3 * hidden]
        hr = hg[:, 0:hidden]
        hz = hg[:, hidden:2 * hidden]
        hn = hg[:, 2 * hidden:3 * hidden]
        r = jax.nn.sigmoid(xr + hr)
        z = jax.nn.sigmoid(xz + hz)
        n = jnp.tanh(xn + r * (hn + bhn))
        h_new = (1.0 - z) * n + z * h
        out_ref[pl.ds(t, 1), :] = h_new
        return h_new

    h0 = jnp.zeros((1, hidden), jnp.float32)
    jax.lax.fori_loop(0, seq_len, step, h0)


def pallas_gru_scan(xg_b, whh_t_b, bhn_b):
    """Batched GRU recurrence.

    xg_b:    (B, T, 3H) f32 — x @ W_ih^T + b_ih + [b_hh_r, b_hh_z, 0]
    whh_t_b: (B, H, 3H) bf16
    bhn_b:   (B, 1, H)  f32 (the n-gate hidden bias)
    returns  (B, T, H)  f32 hidden states for every timestep.
    """
    B, T, H3 = xg_b.shape
    H = H3 // 3
    return pl.pallas_call(
        functools.partial(_gru_scan_kernel, hidden=H, seq_len=T),
        out_shape=jax.ShapeDtypeStruct((B, T, H), jnp.float32),
        grid_spec=pltpu.PrefetchScalarGridSpec(
            num_scalar_prefetch=0,
            grid=(B,),
            in_specs=[
                pl.BlockSpec((None, T, H3), lambda b: (b, 0, 0)),
                pl.BlockSpec((None, H, H3), lambda b: (b, 0, 0)),
                pl.BlockSpec((None, 1, H), lambda b: (b, 0, 0)),
            ],
            out_specs=pl.BlockSpec((None, T, H), lambda b: (b, 0, 0)),
        ),
        compiler_params=pltpu.CompilerParams(
            dimension_semantics=("parallel",),
            # bf16 W_hh^T (6 MB for the dialogue GRU) double-buffered + small
            # activations; 32 MiB leaves headroom even on v7x (64 MiB VMEM).
            vmem_limit_bytes=32 * 1024 * 1024),
    )(xg_b.astype(jnp.float32), whh_t_b.astype(jnp.bfloat16),
      bhn_b.astype(jnp.float32))


# --------------------------- conv helpers (glue + Pallas matmul) -------------

def _im2col_nhwc(x, kh, kw, stride, pad):
    # x: (N, H, W, C) -> patches (N*OH*OW, kh*kw*C)
    N, H, W, C = x.shape
    xp = jnp.pad(x, ((0, 0), (pad, pad), (pad, pad), (0, 0)))
    OH = (H + 2 * pad - kh) // stride + 1
    OW = (W + 2 * pad - kw) // stride + 1
    cols = []
    for i in range(kh):
        for j in range(kw):
            cols.append(
                xp[:, i:i + stride * OH:stride, j:j + stride * OW:stride, :])
    cols = jnp.stack(cols, axis=3)                    # (N, OH, OW, kh*kw, C)
    return cols.reshape(N * OH * OW, kh * kw * C), OH, OW


def pallas_conv2d_nhwc(x, weight, bias, stride, pad, activation="relu"):
    # x: NHWC, weight: (Cout, Cin, kh, kw) (PyTorch layout)
    N = x.shape[0]
    Cout, Cin, kh, kw = weight.shape
    x = x.astype(jnp.bfloat16)                        # uint8/relu outputs: safe
    cols, OH, OW = _im2col_nhwc(x, kh, kw, stride, pad)
    w_mat = weight.transpose(2, 3, 1, 0).reshape(kh * kw * Cin, Cout)
    out = pallas_linear(cols, w_mat, bias, activation=activation, tm_max=1024)
    return out.reshape(N, OH, OW, Cout)


def maxpool2x2_nhwc(x):
    N, H, W, C = x.shape
    return x.reshape(N, H // 2, 2, W // 2, 2, C).max(axis=(2, 4))


# --------------------------- parameter init ----------------------------------

def _uniform(key, shape, bound):
    return jax.random.uniform(key, shape, jnp.float32, -bound, bound)


def _gru_params(key, in_dim, hidden):
    k1, k2, k3, k4 = jax.random.split(key, 4)
    bound = 1.0 / (hidden ** 0.5)
    return dict(
        w_ih=_uniform(k1, (3 * hidden, in_dim), bound),
        w_hh=_uniform(k2, (3 * hidden, hidden), bound),
        b_ih=_uniform(k3, (3 * hidden,), bound),
        b_hh=_uniform(k4, (3 * hidden,), bound),
    )


def _conv_params(key, cout, cin, k):
    k1, k2 = jax.random.split(key)
    bound = 1.0 / ((cin * k * k) ** 0.5)
    return (_uniform(k1, (cout, cin, k, k), bound), _uniform(k2, (cout,), bound))


def _linear_params(key, out_dim, in_dim):
    k1, k2 = jax.random.split(key)
    bound = 1.0 / (in_dim ** 0.5)
    return (_uniform(k1, (out_dim, in_dim), bound), _uniform(k2, (out_dim,), bound))


def init_params(key):
    ks = jax.random.split(key, 9)
    params = {
        "plan0": _gru_params(ks[0], PLAN_EMB_IN, PLAN_EMB_OUT),
        "plan1": _gru_params(ks[1], PLAN_EMB_IN, PLAN_EMB_OUT),
        "plan2": _gru_params(ks[2], PLAN_EMB_IN, PLAN_EMB_OUT),
        "dialogue": _gru_params(ks[3], DRNN_IN, DLIST_HIDDEN),
        "conv1": _conv_params(ks[4], 8, 3, 3),
        "conv2": _conv_params(ks[5], 32, 8, 5),
        "conv3": _conv_params(ks[6], FRAME_EMB // 4, 32, 5),
        "conv4": _conv_params(ks[7], FRAME_EMB, FRAME_EMB // 4, 3),
    }
    hkeys = jax.random.split(ks[8], len(HEAD_DIMS))
    qheads = []
    for hk, od in zip(hkeys, HEAD_DIMS):
        k1, k2 = jax.random.split(hk)
        w1, b1 = _linear_params(k1, 512, Q_IN_SIZE)
        w2, b2 = _linear_params(k2, od, 512)
        qheads.append((w1, b1, w2, b2))
    params["qheads"] = qheads
    return params


# --------------------------- model forward -----------------------------------

def _gru_input_bias(p, hidden):
    # Fold b_ih and the r/z part of b_hh into the input projection bias; the
    # n-gate hidden bias stays separate (it is gated by r in PyTorch's GRU).
    return p["b_ih"] + jnp.concatenate(
        [p["b_hh"][:2 * hidden], jnp.zeros((hidden,), jnp.float32)])


def model_forward(params, d, q, frames, global_plan_seq, p1_plan_seq, p2_plan_seq,
                  global_plan=True, player_plan=False, sel1=0.0, sel2=0.0):
    # ----- conv tower over frames, NHWC end-to-end -----
    x = frames.astype(jnp.bfloat16)       # uint8 (0..255) is exact in bf16
    # Two eval-mode BatchNorm2d (mean=0, var=1) per block fold to a scalar scale.
    bn_scale = (1.0 / jnp.sqrt(jnp.float32(1.0 + 1e-5))) ** 2
    for name, stride, padd in (("conv1", 1, 1), ("conv2", 2, 2), ("conv3", 2, 2)):
        w, b = params[name]
        # ReLU commutes with the 2x2 maxpool (monotone), so it is fused in the
        # matmul epilogue; pooling happens after.
        x = pallas_conv2d_nhwc(x, w * bn_scale, b * bn_scale, stride, padd,
                               activation="relu")
        x = maxpool2x2_nhwc(x)
    w, b = params["conv4"]
    x = pallas_conv2d_nhwc(x, w, b, 1, 0, activation="relu")
    frame_feat = x.reshape(-1, FRAME_EMB)                        # (T, 512)

    # ----- 3 plan embedders: block-diag fused input proj + one batched scan ---
    # TODO(synk): assumes the three plan sequences share the same length.
    plans = [params["plan0"], params["plan1"], params["plan2"]]
    seqs = [global_plan_seq, p1_plan_seq, p2_plan_seq]
    P = seqs[0].shape[0]
    H = PLAN_EMB_OUT
    x_cat = jnp.concatenate([s.astype(jnp.float32) for s in seqs], axis=1)  # (P, 243)
    w_blk = jnp.zeros((3 * PLAN_EMB_IN, 3 * 3 * H), jnp.float32)
    b_parts = []
    for i, p in enumerate(plans):
        w_blk = w_blk.at[i * PLAN_EMB_IN:(i + 1) * PLAN_EMB_IN,
                         i * 3 * H:(i + 1) * 3 * H].set(p["w_ih"].T)
        b_parts.append(_gru_input_bias(p, H))
    b_cat = jnp.concatenate(b_parts)
    xg_cat = pallas_linear(x_cat, w_blk, b_cat)                  # (P, 288)
    xg_b = xg_cat.reshape(P, 3, 3 * H).transpose(1, 0, 2)        # (3, P, 96)
    whh_b = jnp.stack([p["w_hh"].T for p in plans])              # (3, 32, 96)
    bhn_b = jnp.stack([p["b_hh"][2 * H:] for p in plans]).reshape(3, 1, H)
    h_b = pallas_gru_scan(xg_b, whh_b, bhn_b)                    # (3, P, 32)
    e0, e1, e2 = h_b[0, -1], h_b[1, -1], h_b[2, -1]

    if (not global_plan) and (not player_plan):
        plan_emb = 0.0 * jnp.concatenate([e0, e1, e2])
    elif global_plan:
        plan_emb = jnp.concatenate([e0, e1, e2])
    else:
        plan_emb = jnp.concatenate([0.0 * e0, sel1 * e1, sel2 * e2])

    # ----- dialogue listener GRU -----
    dl = params["dialogue"]
    Hd = DLIST_HIDDEN
    u = jnp.concatenate(
        [d.astype(jnp.float32), q.astype(jnp.float32), frame_feat], axis=-1)
    xg_d = pallas_linear(u, dl["w_ih"].T, _gru_input_bias(dl, Hd))   # (T, 3072)
    y = pallas_gru_scan(xg_d[None], dl["w_hh"].T[None],
                        dl["b_hh"][2 * Hd:].reshape(1, 1, Hd))[0]    # (T, 1024)

    # ----- 9 question heads fused into two matmuls -----
    T = y.shape[0]
    z = jnp.concatenate(
        [jnp.broadcast_to(plan_emb, (T, plan_emb.shape[0])),
         q.astype(jnp.float32), y], axis=-1)                     # (T, 1220)
    qheads = params["qheads"]
    w1_cat = jnp.concatenate([w1.T for (w1, b1, w2, b2) in qheads], axis=1)
    b1_cat = jnp.concatenate([b1 for (w1, b1, w2, b2) in qheads])
    n_out = sum(HEAD_DIMS)
    w2_blk = jnp.zeros((len(qheads) * 512, n_out), jnp.float32)
    b2_cat = jnp.concatenate([b2 for (w1, b1, w2, b2) in qheads])
    col = 0
    for i, (w1, b1, w2, b2) in enumerate(qheads):
        od = w2.shape[0]
        w2_blk = w2_blk.at[i * 512:(i + 1) * 512, col:col + od].set(w2.T)
        col += od
    h1 = pallas_linear(z, w1_cat, b1_cat, activation="gelu")     # (T, 4608)
    out_cat = pallas_linear(h1, w2_blk, b2_cat)                  # (T, 62)

    head_outs = []
    col = 0
    for od in HEAD_DIMS:
        head_outs.append(out_cat[:, col:col + od])
        col += od
    return y, plan_emb, head_outs


# --------------------------- main ---------------------------------------------

if __name__ == "__main__":
    key = jax.random.PRNGKey(0)
    pkey, dkey = jax.random.split(key)
    params = init_params(pkey)

    T, P = 3, 5      # 3 game timesteps, plan sequences of length 5
    k1, k2, k3, k4, k5, k6 = jax.random.split(dkey, 6)
    d = jax.random.normal(k1, (T, 1026), jnp.float32)            # parsed dialogue vecs
    q = jax.random.normal(k2, (T, Q_EMB), jnp.float32)           # parsed question vecs
    frames = jax.random.randint(k3, (T, 96, 96, 3), 0, 256,
                                jnp.int32).astype(jnp.uint8)     # NHWC uint8 frames
    gplan = jax.random.normal(k4, (P, PLAN_EMB_IN), jnp.float32)
    p1plan = jax.random.normal(k5, (P, PLAN_EMB_IN), jnp.float32)
    p2plan = jax.random.normal(k6, (P, PLAN_EMB_IN), jnp.float32)

    y, plan_emb, heads = model_forward(params, d, q, frames, gplan, p1plan, p2plan,
                                       global_plan=True)
    jax.block_until_ready((y, plan_emb, heads))

    assert y.shape == (T, DLIST_HIDDEN)
    assert plan_emb.shape == (3 * PLAN_EMB_OUT,)
    assert [h.shape for h in heads] == [(T, o) for o in HEAD_DIMS]
    print("KERNEL_OK")
</pallas_src>

<mosaic_0001>
module attributes {stable_mosaic.version = 11 : i64} {
  func.func @_matmul_single_k_kernel(%arg0: i32, %arg1: i32, %arg2: i32, %arg3: memref<1024x27xbf16, #tpu.memory_space<vmem>>, %arg4: memref<27x8xbf16, #tpu.memory_space<vmem>>, %arg5: memref<1x8xf32, #tpu.memory_space<vmem>>, %arg6: memref<1024x8xf32, #tpu.memory_space<vmem>>) attributes {dimension_semantics = [#tpu.dimension_semantics<parallel>, #tpu.dimension_semantics<parallel>, #tpu.dimension_semantics<arbitrary>], iteration_bounds = array<i64: 27, 1, 1>, scalar_prefetch = 0 : i64, scratch_operands = 0 : i64, tpu.core_type = #tpu.core_type<tc>, window_params = [{transform_indices = @transform_0, window_bounds = array<i64: 1024, 27>}, {transform_indices = @transform_1, window_bounds = array<i64: 27, 8>}, {transform_indices = @transform_2, window_bounds = array<i64: 1, 8>}, {transform_indices = @transform_3, window_bounds = array<i64: 1024, 8>}]} {
    %c0 = arith.constant 0 : index
    %c0_0 = arith.constant 0 : index
    %0 = vector.load %arg3[%c0, %c0_0] : memref<1024x27xbf16, #tpu.memory_space<vmem>>, vector<1024x27xbf16>
    %c0_1 = arith.constant 0 : index
    %c0_2 = arith.constant 0 : index
    %1 = vector.load %arg4[%c0_1, %c0_2] : memref<27x8xbf16, #tpu.memory_space<vmem>>, vector<27x8xbf16>
    %cst = arith.constant dense<0.000000e+00> : vector<1024x8xf32>
    %2 = tpu.matmul %0, %1, %cst {dimension_numbers = #tpu.dot_dimension_numbers<[1], [0], [0], [1], [0, 0, 1, 1], [], []>} : vector<1024x27xbf16>, vector<27x8xbf16>, vector<1024x8xf32> -> vector<1024x8xf32>
    %c0_3 = arith.constant 0 : index
    %c0_4 = arith.constant 0 : index
    %3 = vector.load %arg5[%c0_3, %c0_4] : memref<1x8xf32, #tpu.memory_space<vmem>>, vector<1x8xf32>
    %4 = vector.broadcast %3 : vector<1x8xf32> to vector<1024x8xf32>
    %5 = arith.addf %2, %4 : vector<1024x8xf32>
    %cst_5 = arith.constant 0.000000e+00 : f32
    %6 = vector.broadcast %cst_5 : f32 to vector<1024x8xf32>
    %7 = arith.maximumf %5, %6 : vector<1024x8xf32>
    %c0_6 = arith.constant 0 : index
    %c0_7 = arith.constant 0 : index
    %8 = vector.load %arg6[%c0_6, %c0_7] : memref<1024x8xf32, #tpu.memory_space<vmem>>, vector<1024x8xf32>
    tpu.vector_store %arg6[%c0_6, %c0_7], %7 {strides = array<i32>} : memref<1024x8xf32, #tpu.memory_space<vmem>>, vector<1024x8xf32>,
    return
  }
  func.func @transform_0(%arg0: i32, %arg1: i32, %arg2: i32) -> (i32, i32) {
    %c0_i32 = arith.constant 0 : i32
    return %arg0, %arg2 : i32, i32
  }
  func.func @transform_1(%arg0: i32, %arg1: i32, %arg2: i32) -> (i32, i32) {
    %c0_i32 = arith.constant 0 : i32
    return %arg2, %arg1 : i32, i32
  }
  func.func @transform_2(%arg0: i32, %arg1: i32, %arg2: i32) -> (i32, i32) {
    %c0_i32 = arith.constant 0 : i32
    %c0_i32_0 = arith.constant 0 : i32
    return %c0_i32, %arg1 : i32, i32
  }
  func.func @transform_3(%arg0: i32, %arg1: i32, %arg2: i32) -> (i32, i32) {
    %c0_i32 = arith.constant 0 : i32
    return %arg0, %arg1 : i32, i32
  }
}

</mosaic_0001>

<llo_original>
// kernel: tpu_custom_call.1
$region0: #{tpu_custom_call.1}
  #allocation0 [shape = 'u32[]', space=smem, size = 0x4, offset = 0x4, fixed_abs, tag = 'smem constant byte address 0x4 - core index']
  #allocation1 [shape = 'u32[144,128]{1,0:T(1,128)}', space=vmem, size = 0x12000, scoped, tag = 'internal scratch']
  %s0 = inlined_call_operand.vmem [shape: bf16[27648,27], index: 0, kind: input, shape index: {}]
  %s1 = inlined_call_operand.vmem [shape: bf16[27,8], index: 1, kind: input, shape index: {}]
  %s2 = inlined_call_operand.vmem [shape: f32[1,8], index: 2, kind: input, shape index: {}]
  %s3 = inlined_call_operand.vmem [shape: f32[27648,8], index: 3, kind: output, shape index: {}]
  %s4 = sld [smem:[#allocation0]]
  $region45: #{tpu_custom_call.1} parent=0
    _
  %s6 = ssub.s32 1, %s4
  %s7 = scalar_select 0, %s6, %s4
  loop: start=0, step=1, limit=29
  $region2: #{tpu_custom_call.1} parent=0 // loop_pre_header
    _
  $region3: #{tpu_custom_call.1} parent=0 // loop_header
    %s9 = sphi 0, %s13
    %p10 = scmp.ge.s32.totalorder %s9, 29
    %s16 = sphi 0, %s35
    %s17 = sphi 0, %s31
    %s18 = sphi 0, %s27
    %s19 = sphi 0, %s16
    %s20 = sphi 0, %s17
    %s21 = sphi 0, %s18
    %s22 = sphi 0, %s19
    %s23 = sphi 0, %s20
    %s24 = sphi 0, %s21
    %s40 = sphi 0, %s42
    %s43 = sphi 0, %s40
    %s44 = sphi 0, %s43
    %s60 = sphi 0, %s44
    %s68 = sphi 0, %s70
    %s71 = sphi 0, %s68
    %s72 = sphi 0, %s71
    %s88 = sphi 0, %s72
    %s94 = sphi 0, %s96
    %s97 = sphi 0, %s94
    %s98 = sphi 0, %s97
    %s114 = sphi 0, %s98
    %s122 = sphi 0, %s124
    %s125 = sphi 0, %s122
    %s126 = sphi 0, %s125
    %s142 = sphi 0, %s126
  $region4: #{tpu_custom_call.1} parent=0 // loop_header_branch
    %12 = sbr.rel (%p10) target = $region8
  $region5: #{tpu_custom_call.1} parent=0 // loop_body
    %s14 = ssub.s32 %s9, 1
    %s15 = ssub.s32 %s9, 2
    %s25 = sadd.s32 1, %s18
    %p26 = scmp.ge.s32.totalorder %s25, 1
    %s27 = scalar_select %p26, 0, %s25
    %s28 = sadd.s32 1, %s17
    %s29 = scalar_select %p26, %s28, %s17
    %p30 = scmp.ge.s32.totalorder %s29, 1
    %s31 = scalar_select %p30, 0, %s29
    %s32 = sadd.s32 1, %s16
    %s33 = scalar_select %p30, %s32, %s16
    %p34 = scmp.ge.s32.totalorder %s33, 27
    %s35 = scalar_select %p34, 0, %s33
    %s36 = ssub.s32 %s16, %s35
    %s37 = ssub.s32 %s18, %s27
    %s38 = sor.u32 %s36, %s37
    %p39 = scmp.eq.s32.totalorder %s38, 0
    %s41 = sadd.s32 %s40, 1
    %s42 = scalar_select %p39, %s40, %s41
    %p45 = pneg %p39
    %p46 = scmp.eq.s32.totalorder %s9, 26
    %p47 = por %p45, %p46
    %p48 = scmp.ne.s32.totalorder %s40, %s43
    %p49 = scmp.eq.s32.totalorder %s9, 0
    %p50 = por %p48, %p49
    %p51 = scmp.ne.s32.totalorder %s40, %s43
    %p52 = scmp.eq.s32.totalorder %s14, 26
    %p53 = por %p51, %p52
    %p54 = scmp.ne.s32.totalorder %s43, %s44
    %p55 = scmp.eq.s32.totalorder %s14, 0
    %p56 = por %p54, %p55
    %p57 = scmp.ne.s32.totalorder %s43, %s44
    %p58 = scmp.eq.s32.totalorder %s15, 26
    %p59 = por %p57, %p58
    %p61 = scmp.ne.s32.totalorder %s44, %s60
    %p62 = scmp.eq.s32.totalorder %s15, 0
    %p63 = por %p61, %p62
    %s64 = ssub.s32 %s18, %s27
    %s65 = ssub.s32 %s17, %s31
    %s66 = sor.u32 %s64, %s65
    %p67 = scmp.eq.s32.totalorder %s66, 0
    %s69 = sadd.s32 %s68, 1
    %s70 = scalar_select %p67, %s68, %s69
    %p73 = pneg %p67
    %p74 = scmp.eq.s32.totalorder %s9, 26
    %p75 = por %p73, %p74
    %p76 = scmp.ne.s32.totalorder %s68, %s71
    %p77 = scmp.eq.s32.totalorder %s9, 0
    %p78 = por %p76, %p77
    %p79 = scmp.ne.s32.totalorder %s68, %s71
    %p80 = scmp.eq.s32.totalorder %s14, 26
    %p81 = por %p79, %p80
    %p82 = scmp.ne.s32.totalorder %s71, %s72
    %p83 = scmp.eq.s32.totalorder %s14, 0
    %p84 = por %p82, %p83
    %p85 = scmp.ne.s32.totalorder %s71, %s72
    %p86 = scmp.eq.s32.totalorder %s15, 26
    %p87 = por %p85, %p86
    %p89 = scmp.ne.s32.totalorder %s72, %s88
    %p90 = scmp.eq.s32.totalorder %s15, 0
    %p91 = por %p89, %p90
    %s92 = ssub.s32 %s17, %s31
    %p93 = scmp.eq.s32.totalorder %s92, 0
    %s95 = sadd.s32 %s94, 1
    %s96 = scalar_select %p93, %s94, %s95
    %p99 = pneg %p93
    %p100 = scmp.eq.s32.totalorder %s9, 26
    %p101 = por %p99, %p100
    %p102 = scmp.ne.s32.totalorder %s94, %s97
    %p103 = scmp.eq.s32.totalorder %s9, 0
    %p104 = por %p102, %p103
    %p105 = scmp.ne.s32.totalorder %s94, %s97
    %p106 = scmp.eq.s32.totalorder %s14, 26
    %p107 = por %p105, %p106
    %p108 = scmp.ne.s32.totalorder %s97, %s98
    %p109 = scmp.eq.s32.totalorder %s14, 0
    %p110 = por %p108, %p109
    %p111 = scmp.ne.s32.totalorder %s97, %s98
    %p112 = scmp.eq.s32.totalorder %s15, 26
    %p113 = por %p111, %p112
    %p115 = scmp.ne.s32.totalorder %s98, %s114
    %p116 = scmp.eq.s32.totalorder %s15, 0
    %p117 = por %p115, %p116
    %s118 = ssub.s32 %s16, %s35
    %s119 = ssub.s32 %s17, %s31
    %s120 = sor.u32 %s118, %s119
    %p121 = scmp.eq.s32.totalorder %s120, 0
    %s123 = sadd.s32 %s122, 1
    %s124 = scalar_select %p121, %s122, %s123
    %p127 = pneg %p121
    %p128 = scmp.eq.s32.totalorder %s9, 26
    %p129 = por %p127, %p128
    %p130 = scmp.ne.s32.totalorder %s122, %s125
    %p131 = scmp.eq.s32.totalorder %s9, 0
    %p132 = por %p130, %p131
    %p133 = scmp.ne.s32.totalorder %s122, %s125
    %p134 = scmp.eq.s32.totalorder %s14, 26
    %p135 = por %p133, %p134
    %p136 = scmp.ne.s32.totalorder %s125, %s126
    %p137 = scmp.eq.s32.totalorder %s14, 0
    %p138 = por %p136, %p137
    %p139 = scmp.ne.s32.totalorder %s125, %s126
    %p140 = scmp.eq.s32.totalorder %s15, 26
    %p141 = por %p139, %p140
    %p143 = scmp.ne.s32.totalorder %s126, %s142
    %p144 = scmp.eq.s32.totalorder %s15, 0
    %p145 = por %p143, %p144
    %p146 = scmp.le.s32.totalorder 1, %s9
    %p147 = scmp.lt.s32.totalorder %s9, 28
    %p148 = pnand %p146, %p147
    %p149 = pneg %p148
    // Predicated region
    $region9: #{tpu_custom_call.1} parent=5 // pred_check
      _
    $region10: #{tpu_custom_call.1} parent=5 // pred_check_branch
      %151 = sbr.rel (%p148) target = $region12
    $region11: #{tpu_custom_call.1} parent=5 // pred_region
      %s152 = ssub.s32 %s9, 1
      // Predicated region
      $region13: #{tpu_custom_call.1} parent=11 // pred_check
        %p153 = pneg %p84
      $region14: #{tpu_custom_call.1} parent=11 // pred_check_branch
        %155 = sbr.rel (%p153) target = $region16
      $region15: #{tpu_custom_call.1} parent=11 // pred_region
        %s156 = smul.u32 4, %s21
        %p157 = scmp.lt.s32.totalorder %s156, 3
        %s158 = scalar_select %p157, %s156, 3
        %p159 = scmp.lt.s32.totalorder %s20, 0
        %s160 = scalar_select %p159, %s20, 0
        %s161 = sadd.s32 %s160, %s158
        %s162 = smul.addr %s161, 4
        %s163 = scalar_lea.vmem %s1, %s162
        %s164 = smul.u32 4, %s21
      $region16: #{tpu_custom_call.1} parent=11 // pred_fallthru
        _
      // Predicated region
      $region17: #{tpu_custom_call.1} parent=11 // pred_check
        %p165 = pneg %p110
      $region18: #{tpu_custom_call.1} parent=11 // pred_check_branch
        %167 = sbr.rel (%p165) target = $region20
      $region19: #{tpu_custom_call.1} parent=11 // pred_region
        %p168 = scmp.lt.s32.totalorder %s20, 0
        %s169 = scalar_select %p168, %s20, 0
        %s170 = scalar_lea.vmem %s2, %s169
      $region20: #{tpu_custom_call.1} parent=11 // pred_fallthru
        _
    $region12: #{tpu_custom_call.1} parent=5 // pred_fallthru
      _
    %p171 = scmp.lt.s32.totalorder %s9, 27
    // Predicated region
    $region21: #{tpu_custom_call.1} parent=5 // pred_check
      %p172 = pneg %p171
    $region22: #{tpu_custom_call.1} parent=5 // pred_check_branch
      %174 = sbr.rel (%p172) target = $region24
    $region23: #{tpu_custom_call.1} parent=5 // pred_region
      // Predicated region
      $region25: #{tpu_custom_call.1} parent=23 // pred_check
        %p175 = pneg %p50
      $region26: #{tpu_custom_call.1} parent=23 // pred_check_branch
        %177 = sbr.rel (%p175) target = $region28
      $region27: #{tpu_custom_call.1} parent=23 // pred_region
        %s178 = smul.u32 128, %s16
        %p179 = scmp.lt.s32.totalorder %s178, 3455
        %s180 = scalar_select %p179, %s178, 3455
        %p181 = scmp.lt.s32.totalorder %s18, 0
        %s182 = scalar_select %p181, %s18, 0
        %s183 = sadd.s32 %s182, %s180
        %s184 = smul.addr %s183, 4
        %s185 = scalar_lea.vmem %s0, %s184
        %s186 = smul.u32 128, %s16
      $region28: #{tpu_custom_call.1} parent=23 // pred_fallthru
        _
    $region24: #{tpu_custom_call.1} parent=5 // pred_fallthru
      _
    %p187 = scmp.le.s32.totalorder 1, %s9
    %p188 = scmp.lt.s32.totalorder %s9, 28
    %p189 = pnand %p187, %p188
    %p190 = pneg %p189
    // Predicated region
    $region29: #{tpu_custom_call.1} parent=5 // pred_check
      _
    $region30: #{tpu_custom_call.1} parent=5 // pred_check_branch
      %192 = sbr.rel (%p189) target = $region32
    $region31: #{tpu_custom_call.1} parent=5 // pred_region
      %s193 = ssub.s32 %s9, 1
      %s194 = smul.u32 128, %s19
      %p195 = scmp.lt.s32.totalorder %s194, 3455
      %s196 = scalar_select %p195, %s194, 3455
      %p197 = scmp.lt.s32.totalorder %s21, 0
      %s198 = scalar_select %p197, %s21, 0
      %s199 = sadd.s32 %s198, %s196
      %s200 = smul.addr %s199, 4
      %s201 = scalar_lea.vmem %s0, %s200
      %p202 = pneg %p56
      %p203 = pneg %p53
      %s204 = smul.u32 4, %s21
      %p205 = scmp.lt.s32.totalorder %s204, 3
      %s206 = scalar_select %p205, %s204, 3
      %p207 = scmp.lt.s32.totalorder %s20, 0
      %s208 = scalar_select %p207, %s20, 0
      %s209 = sadd.s32 %s208, %s206
      %s210 = smul.addr %s209, 4
      %s211 = scalar_lea.vmem %s1, %s210
      %p212 = pneg %p84
      %p213 = pneg %p81
      %p214 = scmp.lt.s32.totalorder %s20, 0
      %s215 = scalar_select %p214, %s20, 0
      %s216 = scalar_lea.vmem %s2, %s215
      %p217 = pneg %p110
      %p218 = pneg %p107
      %p219 = pneg %p138
      %p220 = pneg %p135
      %s221 = smul.u32 128, %s19
      %p222 = scmp.lt.s32.totalorder %s221, 3455
      %s223 = scalar_select %p222, %s221, 3455
      %p224 = scmp.lt.s32.totalorder %s20, 0
      %s225 = scalar_select %p224, %s20, 0
      %s226 = sadd.s32 %s225, %s223
      %s227 = smul.addr %s226, 8
      %s228 = scalar_lea.vmem %s3, %s227
      %s229 = smul.u32 128, %s19
      %p230 = scmp.lt.s32.totalorder %s229, 3455
      %s231 = scalar_select %p230, %s229, 3455
      %p232 = scmp.lt.s32.totalorder %s21, 0
      %s233 = scalar_select %p232, %s21, 0
      %s234 = sadd.s32 %s233, %s231
      %s235 = smul.addr %s234, 4
      %s236 = scalar_lea.vmem %s0, %s235
      %s237 = smul.u32 128, %s19
      %s238 = smul.u32 4, %s21
      %p239 = scmp.lt.s32.totalorder %s238, 3
      %s240 = scalar_select %p239, %s238, 3
      %p241 = scmp.lt.s32.totalorder %s20, 0
      %s242 = scalar_select %p241, %s20, 0
      %s243 = sadd.s32 %s242, %s240
      %s244 = smul.addr %s243, 4
      %s245 = scalar_lea.vmem %s1, %s244
      %s246 = smul.u32 4, %s21
      %p247 = scmp.lt.s32.totalorder %s20, 0
      %s248 = scalar_select %p247, %s20, 0
      %s249 = scalar_lea.vmem %s2, %s248
      %s250 = smul.u32 128, %s19
      %p251 = scmp.lt.s32.totalorder %s250, 3455
      %s252 = scalar_select %p251, %s250, 3455
      %p253 = scmp.lt.s32.totalorder %s20, 0
      %s254 = scalar_select %p253, %s20, 0
      %s255 = sadd.s32 %s254, %s252
      %s256 = smul.addr %s255, 8
      %s257 = scalar_lea.vmem %s3, %s256
      %s258 = smul.u32 128, %s19
      %v260 = vld [vmem:[%s236] sm:$0xf]
      %v261 = vld [vmem:[%s236 + $0x4] sm:$0xf]
      %v262 = vld [vmem:[%s236 + $0x8] sm:$0xf]
      %v263 = vld [vmem:[%s236 + $0xc] sm:$0xf]
      %v264 = vld [vmem:[%s236 + $0x10] sm:$0xf]
      %v265 = vld [vmem:[%s236 + $0x14] sm:$0xf]
      %v266 = vld [vmem:[%s236 + $0x18] sm:$0xf]
      %v267 = vld [vmem:[%s236 + $0x1c] sm:$0xf]
      %v268 = vld [vmem:[%s236 + $0x20] sm:$0xf]
      %v269 = vld [vmem:[%s236 + $0x24] sm:$0xf]
      %v270 = vld [vmem:[%s236 + $0x28] sm:$0xf]
      %v271 = vld [vmem:[%s236 + $0x2c] sm:$0xf]
      %v272 = vld [vmem:[%s236 + $0x30] sm:$0xf]
      %v273 = vld [vmem:[%s236 + $0x34] sm:$0xf]
      %v274 = vld [vmem:[%s236 + $0x38] sm:$0xf]
      %v275 = vld [vmem:[%s236 + $0x3c] sm:$0xf]
      %v276 = vld [vmem:[%s236 + $0x40] sm:$0xf]
      %v277 = vld [vmem:[%s236 + $0x44] sm:$0xf]
      %v278 = vld [vmem:[%s236 + $0x48] sm:$0xf]
      %v279 = vld [vmem:[%s236 + $0x4c] sm:$0xf]
      %v280 = vld [vmem:[%s236 + $0x50] sm:$0xf]
      %v281 = vld [vmem:[%s236 + $0x54] sm:$0xf]
      %v282 = vld [vmem:[%s236 + $0x58] sm:$0xf]
      %v283 = vld [vmem:[%s236 + $0x5c] sm:$0xf]
      %v284 = vld [vmem:[%s236 + $0x60] sm:$0xf]
      %v285 = vld [vmem:[%s236 + $0x64] sm:$0xf]
      %v286 = vld [vmem:[%s236 + $0x68] sm:$0xf]
      %v287 = vld [vmem:[%s236 + $0x6c] sm:$0xf]
      %v288 = vld [vmem:[%s236 + $0x70] sm:$0xf]
      %v289 = vld [vmem:[%s236 + $0x74] sm:$0xf]
      %v290 = vld [vmem:[%s236 + $0x78] sm:$0xf]
      %v291 = vld [vmem:[%s236 + $0x7c] sm:$0xf]
      %v292 = vld [vmem:[%s236 + $0x80] sm:$0xf]
      %v293 = vld [vmem:[%s236 + $0x84] sm:$0xf]
      %v294 = vld [vmem:[%s236 + $0x88] sm:$0xf]
      %v295 = vld [vmem:[%s236 + $0x8c] sm:$0xf]
      %v296 = vld [vmem:[%s236 + $0x90] sm:$0xf]
      %v297 = vld [vmem:[%s236 + $0x94] sm:$0xf]
      %v298 = vld [vmem:[%s236 + $0x98] sm:$0xf]
      %v299 = vld [vmem:[%s236 + $0x9c] sm:$0xf]
      %v300 = vld [vmem:[%s236 + $0xa0] sm:$0xf]
      %v301 = vld [vmem:[%s236 + $0xa4] sm:$0xf]
      %v302 = vld [vmem:[%s236 + $0xa8] sm:$0xf]
      %v303 = vld [vmem:[%s236 + $0xac] sm:$0xf]
      %v304 = vld [vmem:[%s236 + $0xb0] sm:$0xf]
      %v305 = vld [vmem:[%s236 + $0xb4] sm:$0xf]
      %v306 = vld [vmem:[%s236 + $0xb8] sm:$0xf]
      %v307 = vld [vmem:[%s236 + $0xbc] sm:$0xf]
      %v308 = vld [vmem:[%s236 + $0xc0] sm:$0xf]
      %v309 = vld [vmem:[%s236 + $0xc4] sm:$0xf]
      %v310 = vld [vmem:[%s236 + $0xc8] sm:$0xf]
      %v311 = vld [vmem:[%s236 + $0xcc] sm:$0xf]
      %v312 = vld [vmem:[%s236 + $0xd0] sm:$0xf]
      %v313 = vld [vmem:[%s236 + $0xd4] sm:$0xf]
      %v314 = vld [vmem:[%s236 + $0xd8] sm:$0xf]
      %v315 = vld [vmem:[%s236 + $0xdc] sm:$0xf]
      %v316 = vld [vmem:[%s236 + $0xe0] sm:$0xf]
      %v317 = vld [vmem:[%s236 + $0xe4] sm:$0xf]
      %v318 = vld [vmem:[%s236 + $0xe8] sm:$0xf]
      %v319 = vld [vmem:[%s236 + $0xec] sm:$0xf]
      %v320 = vld [vmem:[%s236 + $0xf0] sm:$0xf]
      %v321 = vld [vmem:[%s236 + $0xf4] sm:$0xf]
      %v322 = vld [vmem:[%s236 + $0xf8] sm:$0xf]
      %v323 = vld [vmem:[%s236 + $0xfc] sm:$0xf]
      %v324 = vld [vmem:[%s236 + $0x100] sm:$0xf]
      %v325 = vld [vmem:[%s236 + $0x104] sm:$0xf]
      %v326 = vld [vmem:[%s236 + $0x108] sm:$0xf]
      %v327 = vld [vmem:[%s236 + $0x10c] sm:$0xf]
      %v328 = vld [vmem:[%s236 + $0x110] sm:$0xf]
      %v329 = vld [vmem:[%s236 + $0x114] sm:$0xf]
      %v330 = vld [vmem:[%s236 + $0x118] sm:$0xf]
      %v331 = vld [vmem:[%s236 + $0x11c] sm:$0xf]
      %v332 = vld [vmem:[%s236 + $0x120] sm:$0xf]
      %v333 = vld [vmem:[%s236 + $0x124] sm:$0xf]
      %v334 = vld [vmem:[%s236 + $0x128] sm:$0xf]
      %v335 = vld [vmem:[%s236 + $0x12c] sm:$0xf]
      %v336 = vld [vmem:[%s236 + $0x130] sm:$0xf]
      %v337 = vld [vmem:[%s236 + $0x134] sm:$0xf]
      %v338 = vld [vmem:[%s236 + $0x138] sm:$0xf]
      %v339 = vld [vmem:[%s236 + $0x13c] sm:$0xf]
      %v340 = vld [vmem:[%s236 + $0x140] sm:$0xf]
      %v341 = vld [vmem:[%s236 + $0x144] sm:$0xf]
      %v342 = vld [vmem:[%s236 + $0x148] sm:$0xf]
      %v343 = vld [vmem:[%s236 + $0x14c] sm:$0xf]
      %v344 = vld [vmem:[%s236 + $0x150] sm:$0xf]
      %v345 = vld [vmem:[%s236 + $0x154] sm:$0xf]
      %v346 = vld [vmem:[%s236 + $0x158] sm:$0xf]
      %v347 = vld [vmem:[%s236 + $0x15c] sm:$0xf]
      %v348 = vld [vmem:[%s236 + $0x160] sm:$0xf]
      %v349 = vld [vmem:[%s236 + $0x164] sm:$0xf]
      %v350 = vld [vmem:[%s236 + $0x168] sm:$0xf]
      %v351 = vld [vmem:[%s236 + $0x16c] sm:$0xf]
      %v352 = vld [vmem:[%s236 + $0x170] sm:$0xf]
      %v353 = vld [vmem:[%s236 + $0x174] sm:$0xf]
      %v354 = vld [vmem:[%s236 + $0x178] sm:$0xf]
      %v355 = vld [vmem:[%s236 + $0x17c] sm:$0xf]
      %v356 = vld [vmem:[%s236 + $0x180] sm:$0xf]
      %v357 = vld [vmem:[%s236 + $0x184] sm:$0xf]
      %v358 = vld [vmem:[%s236 + $0x188] sm:$0xf]
      %v359 = vld [vmem:[%s236 + $0x18c] sm:$0xf]
      %v360 = vld [vmem:[%s236 + $0x190] sm:$0xf]
      %v361 = vld [vmem:[%s236 + $0x194] sm:$0xf]
      %v362 = vld [vmem:[%s236 + $0x198] sm:$0xf]
      %v363 = vld [vmem:[%s236 + $0x19c] sm:$0xf]
      %v364 = vld [vmem:[%s236 + $0x1a0] sm:$0xf]
      %v365 = vld [vmem:[%s236 + $0x1a4] sm:$0xf]
      %v366 = vld [vmem:[%s236 + $0x1a8] sm:$0xf]
      %v367 = vld [vmem:[%s236 + $0x1ac] sm:$0xf]
      %v368 = vld [vmem:[%s236 + $0x1b0] sm:$0xf]
      %v369 = vld [vmem:[%s236 + $0x1b4] sm:$0xf]
      %v370 = vld [vmem:[%s236 + $0x1b8] sm:$0xf]
      %v371 = vld [vmem:[%s236 + $0x1bc] sm:$0xf]
      %v372 = vld [vmem:[%s236 + $0x1c0] sm:$0xf]
      %v373 = vld [vmem:[%s236 + $0x1c4] sm:$0xf]
      %v374 = vld [vmem:[%s236 + $0x1c8] sm:$0xf]
      %v375 = vld [vmem:[%s236 + $0x1cc] sm:$0xf]
      %v376 = vld [vmem:[%s236 + $0x1d0] sm:$0xf]
      %v377 = vld [vmem:[%s236 + $0x1d4] sm:$0xf]
      %v378 = vld [vmem:[%s236 + $0x1d8] sm:$0xf]
      %v379 = vld [vmem:[%s236 + $0x1dc] sm:$0xf]
      %v380 = vld [vmem:[%s236 + $0x1e0] sm:$0xf]
      %v381 = vld [vmem:[%s236 + $0x1e4] sm:$0xf]
      %v382 = vld [vmem:[%s236 + $0x1e8] sm:$0xf]
      %v383 = vld [vmem:[%s236 + $0x1ec] sm:$0xf]
      %v384 = vld [vmem:[%s236 + $0x1f0] sm:$0xf]
      %v385 = vld [vmem:[%s236 + $0x1f4] sm:$0xf]
      %v386 = vld [vmem:[%s236 + $0x1f8] sm:$0xf]
      %v387 = vld [vmem:[%s236 + $0x1fc] sm:$0xf]
      %v388 = vld [vmem:[%s245] sm:$0xf]
      %v389 = vld [vmem:[%s245 + $0x4] sm:$0xf]
      %v390 = vld [vmem:[%s245 + $0x8] sm:$0xf]
      %v391 = vld [vmem:[%s245 + $0xc] sm:$0x3]
      %v392 = vld [vmem:[%s249] sm:$0x1]
      %v394 = vlaneseq
      %v395 = vshrl.u32 %v394, 7
      %v396 = vsub.s32 0, %v395
      %v397 = vrot.slane %v392, %v396
      %v527 = vunpack.c.l.b16 %v260
      %v528 = vunpack.c.l.b16 %v261
      %v529 = vunpack.c.l.b16 %v262
      %v530 = vunpack.c.l.b16 %v263
      %v531 = vunpack.c.l.b16 %v264
      %v532 = vunpack.c.l.b16 %v265
      %v533 = vunpack.c.l.b16 %v266
      %v534 = vunpack.c.l.b16 %v267
      %v535 = vunpack.c.l.b16 %v268
      %v536 = vunpack.c.l.b16 %v269
      %v537 = vunpack.c.l.b16 %v270
      %v538 = vunpack.c.l.b16 %v271
      %v539 = vunpack.c.l.b16 %v272
      %v540 = vunpack.c.l.b16 %v273
      %v541 = vunpack.c.l.b16 %v274
      %v542 = vunpack.c.l.b16 %v275
      %v543 = vunpack.c.l.b16 %v276
      %v544 = vunpack.c.l.b16 %v277
      %v545 = vunpack.c.l.b16 %v278
      %v546 = vunpack.c.l.b16 %v279
      %v547 = vunpack.c.l.b16 %v280
      %v548 = vunpack.c.l.b16 %v281
      %v549 = vunpack.c.l.b16 %v282
      %v550 = vunpack.c.l.b16 %v283
      %v551 = vunpack.c.l.b16 %v284
      %v552 = vunpack.c.l.b16 %v285
      %v553 = vunpack.c.l.b16 %v286
      %v554 = vunpack.c.l.b16 %v287
      %v555 = vunpack.c.l.b16 %v288
      %v556 = vunpack.c.l.b16 %v289
      %v557 = vunpack.c.l.b16 %v290
      %v558 = vunpack.c.l.b16 %v291
      %v559 = vunpack.c.l.b16 %v292
      %v560 = vunpack.c.l.b16 %v293
      %v561 = vunpack.c.l.b16 %v294
      %v562 = vunpack.c.l.b16 %v295
      %v563 = vunpack.c.l.b16 %v296
      %v564 = vunpack.c.l.b16 %v297
      %v565 = vunpack.c.l.b16 %v298
      %v566 = vunpack.c.l.b16 %v299
      %v567 = vunpack.c.l.b16 %v300
      %v568 = vunpack.c.l.b16 %v301
      %v569 = vunpack.c.l.b16 %v302
      %v570 = vunpack.c.l.b16 %v303
      %v571 = vunpack.c.l.b16 %v304
      %v572 = vunpack.c.l.b16 %v305
      %v573 = vunpack.c.l.b16 %v306
      %v574 = vunpack.c.l.b16 %v307
      %v575 = vunpack.c.l.b16 %v308
      %v576 = vunpack.c.l.b16 %v309
      %v577 = vunpack.c.l.b16 %v310
      %v578 = vunpack.c.l.b16 %v311
      %v579 = vunpack.c.l.b16 %v312
      %v580 = vunpack.c.l.b16 %v313
      %v581 = vunpack.c.l.b16 %v314
      %v582 = vunpack.c.l.b16 %v315
      %v583 = vunpack.c.l.b16 %v316
      %v584 = vunpack.c.l.b16 %v317
      %v585 = vunpack.c.l.b16 %v318
      %v586 = vunpack.c.l.b16 %v319
      %v587 = vunpack.c.l.b16 %v320
      %v588 = vunpack.c.l.b16 %v321
      %v589 = vunpack.c.l.b16 %v322
      %v590 = vunpack.c.l.b16 %v323
      %v591 = vunpack.c.l.b16 %v324
      %v592 = vunpack.c.l.b16 %v325
      %v593 = vunpack.c.l.b16 %v326
      %v594 = vunpack.c.l.b16 %v327
      %v595 = vunpack.c.l.b16 %v328
      %v596 = vunpack.c.l.b16 %v329
      %v597 = vunpack.c.l.b16 %v330
      %v598 = vunpack.c.l.b16 %v331
      %v599 = vunpack.c.l.b16 %v332
      %v600 = vunpack.c.l.b16 %v333
      %v601 = vunpack.c.l.b16 %v334
      %v602 = vunpack.c.l.b16 %v335
      %v603 = vunpack.c.l.b16 %v336
      %v604 = vunpack.c.l.b16 %v337
      %v605 = vunpack.c.l.b16 %v338
      %v606 = vunpack.c.l.b16 %v339
      %v607 = vunpack.c.l.b16 %v340
      %v608 = vunpack.c.l.b16 %v341
      %v609 = vunpack.c.l.b16 %v342
      %v610 = vunpack.c.l.b16 %v343
      %v611 = vunpack.c.l.b16 %v344
      %v612 = vunpack.c.l.b16 %v345
      %v613 = vunpack.c.l.b16 %v346
      %v614 = vunpack.c.l.b16 %v347
      %v615 = vunpack.c.l.b16 %v348
      %v616 = vunpack.c.l.b16 %v349
      %v617 = vunpack.c.l.b16 %v350
      %v618 = vunpack.c.l.b16 %v351
      %v619 = vunpack.c.l.b16 %v352
      %v620 = vunpack.c.l.b16 %v353
      %v621 = vunpack.c.l.b16 %v354
      %v622 = vunpack.c.l.b16 %v355
      %v623 = vunpack.c.l.b16 %v356
      %v624 = vunpack.c.l.b16 %v357
      %v625 = vunpack.c.l.b16 %v358
      %v626 = vunpack.c.l.b16 %v359
      %v627 = vunpack.c.l.b16 %v360
      %v628 = vunpack.c.l.b16 %v361
      %v629 = vunpack.c.l.b16 %v362
      %v630 = vunpack.c.l.b16 %v363
      %v631 = vunpack.c.l.b16 %v364
      %v632 = vunpack.c.l.b16 %v365
      %v633 = vunpack.c.l.b16 %v366
      %v634 = vunpack.c.l.b16 %v367
      %v635 = vunpack.c.l.b16 %v368
      %v636 = vunpack.c.l.b16 %v369
      %v637 = vunpack.c.l.b16 %v370
      %v638 = vunpack.c.l.b16 %v371
      %v639 = vunpack.c.l.b16 %v372
      %v640 = vunpack.c.l.b16 %v373
      %v641 = vunpack.c.l.b16 %v374
      %v642 = vunpack.c.l.b16 %v375
      %v643 = vunpack.c.l.b16 %v376
      %v644 = vunpack.c.l.b16 %v377
      %v645 = vunpack.c.l.b16 %v378
      %v646 = vunpack.c.l.b16 %v379
      %v647 = vunpack.c.l.b16 %v380
      %v648 = vunpack.c.l.b16 %v381
      %v649 = vunpack.c.l.b16 %v382
      %v650 = vunpack.c.l.b16 %v383
      %v651 = vunpack.c.l.b16 %v384
      %v652 = vunpack.c.l.b16 %v385
      %v653 = vunpack.c.l.b16 %v386
      %v654 = vunpack.c.l.b16 %v387
      %v655 = vpack.c.b16 %v528, %v527
      %v656 = vpack.c.b16 %v530, %v529
      %v657 = vpack.c.b16 %v532, %v531
      %v658 = vpack.c.b16 %v534, %v533
      %v659 = vpack.c.b16 %v536, %v535
      %v660 = vpack.c.b16 %v538, %v537
      %v661 = vpack.c.b16 %v540, %v539
      %v662 = vpack.c.b16 %v542, %v541
      %v663 = vpack.c.b16 %v544, %v543
      %v664 = vpack.c.b16 %v546, %v545
      %v665 = vpack.c.b16 %v548, %v547
      %v666 = vpack.c.b16 %v550, %v549
      %v667 = vpack.c.b16 %v552, %v551
      %v668 = vpack.c.b16 %v554, %v553
      %v669 = vpack.c.b16 %v556, %v555
      %v670 = vpack.c.b16 %v558, %v557
      %v671 = vpack.c.b16 %v560, %v559
      %v672 = vpack.c.b16 %v562, %v561
      %v673 = vpack.c.b16 %v564, %v563
      %v674 = vpack.c.b16 %v566, %v565
      %v675 = vpack.c.b16 %v568, %v567
      %v676 = vpack.c.b16 %v570, %v569
      %v677 = vpack.c.b16 %v572, %v571
      %v678 = vpack.c.b16 %v574, %v573
      %v679 = vpack.c.b16 %v576, %v575
      %v680 = vpack.c.b16 %v578, %v577
      %v681 = vpack.c.b16 %v580, %v579
      %v682 = vpack.c.b16 %v582, %v581
      %v683 = vpack.c.b16 %v584, %v583
      %v684 = vpack.c.b16 %v586, %v585
      %v685 = vpack.c.b16 %v588, %v587
      %v686 = vpack.c.b16 %v590, %v589
      %v687 = vpack.c.b16 %v592, %v591
      %v688 = vpack.c.b16 %v594, %v593
      %v689 = vpack.c.b16 %v596, %v595
      %v690 = vpack.c.b16 %v598, %v597
      %v691 = vpack.c.b16 %v600, %v599
      %v692 = vpack.c.b16 %v602, %v601
      %v693 = vpack.c.b16 %v604, %v603
      %v694 = vpack.c.b16 %v606, %v605
      %v695 = vpack.c.b16 %v608, %v607
      %v696 = vpack.c.b16 %v610, %v609
      %v697 = vpack.c.b16 %v612, %v611
      %v698 = vpack.c.b16 %v614, %v613
      %v699 = vpack.c.b16 %v616, %v615
      %v700 = vpack.c.b16 %v618, %v617
      %v701 = vpack.c.b16 %v620, %v619
      %v702 = vpack.c.b16 %v622, %v621
      %v703 = vpack.c.b16 %v624, %v623
      %v704 = vpack.c.b16 %v626, %v625
      %v705 = vpack.c.b16 %v628, %v627
      %v706 = vpack.c.b16 %v630, %v629
      %v707 = vpack.c.b16 %v632, %v631
      %v708 = vpack.c.b16 %v634, %v633
      %v709 = vpack.c.b16 %v636, %v635
      %v710 = vpack.c.b16 %v638, %v637
      %v711 = vpack.c.b16 %v640, %v639
      %v712 = vpack.c.b16 %v642, %v641
      %v713 = vpack.c.b16 %v644, %v643
      %v714 = vpack.c.b16 %v646, %v645
      %v715 = vpack.c.b16 %v648, %v647
      %v716 = vpack.c.b16 %v650, %v649
      %v717 = vpack.c.b16 %v652, %v651
      %v718 = vpack.c.b16 %v654, %v653
      %v723 = vunpack.c.l.b16 %v388
      %v724 = vunpack.c.l.b16 %v389
      %v725 = vunpack.c.l.b16 %v390
      %v726 = vunpack.c.l.b16 %v391
      %v727 = vpack.c.b16 %v724, %v723
      %v728 = vpack.c.b16 %v726, %v725
      %vm730 = vcmask 220160
      %v732 = vsel %vm730, %v655, 0
      %v735 = vsel %vm730, %v656, 0
      %v738 = vsel %vm730, %v657, 0
      %v741 = vsel %vm730, %v658, 0
      %v744 = vsel %vm730, %v659, 0
      %v747 = vsel %vm730, %v660, 0
      %v750 = vsel %vm730, %v661, 0
      %v753 = vsel %vm730, %v662, 0
      %v756 = vsel %vm730, %v663, 0
      %v759 = vsel %vm730, %v664, 0
      %v762 = vsel %vm730, %v665, 0
      %v765 = vsel %vm730, %v666, 0
      %v768 = vsel %vm730, %v667, 0
      %v771 = vsel %vm730, %v668, 0
      %v774 = vsel %vm730, %v669, 0
      %v777 = vsel %vm730, %v670, 0
      %v780 = vsel %vm730, %v671, 0
      %v783 = vsel %vm730, %v672, 0
      %v786 = vsel %vm730, %v673, 0
      %v789 = vsel %vm730, %v674, 0
      %v792 = vsel %vm730, %v675, 0
      %v795 = vsel %vm730, %v676, 0
      %v798 = vsel %vm730, %v677, 0
      %v801 = vsel %vm730, %v678, 0
      %v804 = vsel %vm730, %v679, 0
      %v807 = vsel %vm730, %v680, 0
      %v810 = vsel %vm730, %v681, 0
      %v813 = vsel %vm730, %v682, 0
      %v816 = vsel %vm730, %v683, 0
      %v819 = vsel %vm730, %v684, 0
      %v822 = vsel %vm730, %v685, 0
      %v825 = vsel %vm730, %v686, 0
      %v828 = vsel %vm730, %v687, 0
      %v831 = vsel %vm730, %v688, 0
      %v834 = vsel %vm730, %v689, 0
      %v837 = vsel %vm730, %v690, 0
      %v840 = vsel %vm730, %v691, 0
      %v843 = vsel %vm730, %v692, 0
      %v846 = vsel %vm730, %v693, 0
      %v849 = vsel %vm730, %v694, 0
      %v852 = vsel %vm730, %v695, 0
      %v855 = vsel %vm730, %v696, 0
      %v858 = vsel %vm730, %v697, 0
      %v861 = vsel %vm730, %v698, 0
      %v864 = vsel %vm730, %v699, 0
      %v867 = vsel %vm730, %v700, 0
      %v870 = vsel %vm730, %v701, 0
      %v873 = vsel %vm730, %v702, 0
      %v876 = vsel %vm730, %v703, 0
      %v879 = vsel %vm730, %v704, 0
      %v882 = vsel %vm730, %v705, 0
      %v885 = vsel %vm730, %v706, 0
      %v888 = vsel %vm730, %v707, 0
      %v891 = vsel %vm730, %v708, 0
      %v894 = vsel %vm730, %v709, 0
      %v897 = vsel %vm730, %v710, 0
      %v900 = vsel %vm730, %v711, 0
      %v903 = vsel %vm730, %v712, 0
      %v906 = vsel %vm730, %v713, 0
      %v909 = vsel %vm730, %v714, 0
      %v912 = vsel %vm730, %v715, 0
      %v915 = vsel %vm730, %v716, 0
      %v918 = vsel %vm730, %v717, 0
      %v921 = vsel %vm730, %v718, 0
      %vm923 = vcmask 1044480
      %vm924 = vcmask 1045504
      %v925 = vsel %vm923, 4294967295, 65535
      %v926 = vsel %vm924, %v925, 0
      %v928 = vand.u32 %v728, %v926
      %930 = vmatprep.subr.bf16.mxu0 0
      %931 = vmatpush1.bf16.msra.mxu0 %v727
      %932 = vmatprep.subr.bf16.mxu0 0
      %933 = vmatpush1.bf16.msra.mxu0 %v928
      %934 = vmatprep.subr.bf16.mxu0 0
      %935 = vmatpush1.bf16.msra.mxu0 0
      %936 = vmatprep.subr.bf16.mxu0 0
      %937 = vmatpush1.bf16.msra.mxu0 0
      %938 = vmatprep.subr.bf16.mxu0 0
      %939 = vmatpush1.bf16.msra.mxu0 0
      %940 = vmatprep.subr.bf16.mxu0 0
      %941 = vmatpush1.bf16.msra.mxu0 0
      %942 = vmatprep.subr.bf16.mxu0 0
      %943 = vmatpush1.bf16.msra.mxu0 0
      %944 = vmatprep.subr.bf16.mxu0 0
      %945 = vmatpush1.bf16.msra.mxu0 0
      %946 = vmatprep.subr.bf16.mxu0 0
      %947 = vmatpush1.bf16.msra.mxu0 0
      %948 = vmatprep.subr.bf16.mxu0 0
      %949 = vmatpush1.bf16.msra.mxu0 0
      %950 = vmatprep.subr.bf16.mxu0 0
      %951 = vmatpush1.bf16.msra.mxu0 0
      %952 = vmatprep.subr.bf16.mxu0 0
      %953 = vmatpush1.bf16.msra.mxu0 0
      %954 = vmatprep.subr.bf16.mxu0 0
      %955 = vmatpush1.bf16.msra.mxu0 0
      %956 = vmatprep.subr.bf16.mxu0 0
      %957 = vmatpush1.bf16.msra.mxu0 0
      %958 = vmatprep.subr.bf16.mxu0 0
      %959 = vmatpush1.bf16.msra.mxu0 0
      %960 = vmatprep.subr.bf16.mxu0 0
      %961 = vmatpush1.bf16.msra.mxu0 0
      %962 = vmatprep.mubr.bf16.mxu0 0
      %963 = vmatmul.mubr.bf16.gmra.mrb[0].mxu0 %v732
      %v964 = vpop.f32.mrb[0].mxu0
      %v965 = vadd.f32 %v397, %v964
      %v966 = vpop.f32.mrb[0].mxu0
      %v967 = vpop.f32.mrb[0].mxu0
      %v968 = vadd.f32 %v397, %v967
      %v969 = vpop.f32.mrb[0].mxu0
      %970 = vmatprep.mubr.bf16.mxu0 0
      %971 = vmatmul.mubr.bf16.gmra.mrb[0].mxu0 %v735
      %v972 = vpop.f32.mrb[0].mxu0
      %v973 = vadd.f32 %v397, %v972
      %v974 = vpop.f32.mrb[0].mxu0
      %v975 = vpop.f32.mrb[0].mxu0
      %v976 = vadd.f32 %v397, %v975
      %v977 = vpop.f32.mrb[0].mxu0
      %978 = vmatprep.mubr.bf16.mxu0 0
      %979 = vmatmul.mubr.bf16.gmra.mrb[0].mxu0 %v738
      %v980 = vpop.f32.mrb[0].mxu0
      %v981 = vadd.f32 %v397, %v980
      %v982 = vpop.f32.mrb[0].mxu0
      %v983 = vpop.f32.mrb[0].mxu0
      %v984 = vadd.f32 %v397, %v983
      %v985 = vpop.f32.mrb[0].mxu0
      %986 = vmatprep.mubr.bf16.mxu0 0
      %987 = vmatmul.mubr.bf16.gmra.mrb[0].mxu0 %v741
      %v988 = vpop.f32.mrb[0].mxu0
      %v989 = vadd.f32 %v397, %v988
      %v990 = vpop.f32.mrb[0].mxu0
      %v991 = vpop.f32.mrb[0].mxu0
      %v992 = vadd.f32 %v397, %v991
      %v993 = vpop.f32.mrb[0].mxu0
      %994 = vmatprep.mubr.bf16.mxu0 0
      %995 = vmatmul.mubr.bf16.gmra.mrb[0].mxu0 %v744
      %v996 = vpop.f32.mrb[0].mxu0
      %v997 = vadd.f32 %v397, %v996
      %v998 = vpop.f32.mrb[0].mxu0
      %v999 = vpop.f32.mrb[0].mxu0
      %v1000 = vadd.f32 %v397, %v999
      %v1001 = vpop.f32.mrb[0].mxu0
      %1002 = vmatprep.mubr.bf16.mxu0 0
      %1003 = vmatmul.mubr.bf16.gmra.mrb[0].mxu0 %v747
      %v1004 = vpop.f32.mrb[0].mxu0
      %v1005 = vadd.f32 %v397, %v1004
      %v1006 = vpop.f32.mrb[0].mxu0
      %v1007 = vpop.f32.mrb[0].mxu0
      %v1008 = vadd.f32 %v397, %v1007
      %v1009 = vpop.f32.mrb[0].mxu0
      %1010 = vmatprep.mubr.bf16.mxu0 0
      %1011 = vmatmul.mubr.bf16.gmra.mrb[0].mxu0 %v750
      %v1012 = vpop.f32.mrb[0].mxu0
      %v1013 = vadd.f32 %v397, %v1012
      %v1014 = vpop.f32.mrb[0].mxu0
      %v1015 = vpop.f32.mrb[0].mxu0
      %v1016 = vadd.f32 %v397, %v1015
      %v1017 = vpop.f32.mrb[0].mxu0
      %1018 = vmatprep.mubr.bf16.mxu0 0
      %1019 = vmatmul.mubr.bf16.gmra.mrb[0].mxu0 %v753
      %v1020 = vpop.f32.mrb[0].mxu0
      %v1021 = vadd.f32 %v397, %v1020
      %v1022 = vpop.f32.mrb[0].mxu0
      %v1023 = vpop.f32.mrb[0].mxu0
      %v1024 = vadd.f32 %v397, %v1023
      %v1025 = vpop.f32.mrb[0].mxu0
      %1026 = vmatprep.mubr.bf16.mxu0 0
      %1027 = vmatmul.mubr.bf16.gmra.mrb[0].mxu0 %v756
      %v1028 = vpop.f32.mrb[0].mxu0
      %v1029 = vadd.f32 %v397, %v1028
      %v1030 = vpop.f32.mrb[0].mxu0
      %v1031 = vpop.f32.mrb[0].mxu0
      %v1032 = vadd.f32 %v397, %v1031
      %v1033 = vpop.f32.mrb[0].mxu0
      %1034 = vmatprep.mubr.bf16.mxu0 0
      %1035 = vmatmul.mubr.bf16.gmra.mrb[0].mxu0 %v759
      %v1036 = vpop.f32.mrb[0].mxu0
      %v1037 = vadd.f32 %v397, %v1036
      %v1038 = vpop.f32.mrb[0].mxu0
      %v1039 = vpop.f32.mrb[0].mxu0
      %v1040 = vadd.f32 %v397, %v1039
      %v1041 = vpop.f32.mrb[0].mxu0
      %1042 = vmatprep.mubr.bf16.mxu0 0
      %1043 = vmatmul.mubr.bf16.gmra.mrb[0].mxu0 %v762
      %v1044 = vpop.f32.mrb[0].mxu0
      %v1045 = vadd.f32 %v397, %v1044
      %v1046 = vpop.f32.mrb[0].mxu0
      %v1047 = vpop.f32.mrb[0].mxu0
      %v1048 = vadd.f32 %v397, %v1047
      %v1049 = vpop.f32.mrb[0].mxu0
      %1050 = vmatprep.mubr.bf16.mxu0 0
      %1051 = vmatmul.mubr.bf16.gmra.mrb[0].mxu0 %v765
      %v1052 = vpop.f32.mrb[0].mxu0
      %v1053 = vadd.f32 %v397, %v1052
      %v1054 = vpop.f32.mrb[0].mxu0
      %v1055 = vpop.f32.mrb[0].mxu0
      %v1056 = vadd.f32 %v397, %v1055
      %v1057 = vpop.f32.mrb[0].mxu0
      %1058 = vmatprep.mubr.bf16.mxu0 0
      %1059 = vmatmul.mubr.bf16.gmra.mrb[0].mxu0 %v768
      %v1060 = vpop.f32.mrb[0].mxu0
      %v1061 = vadd.f32 %v397, %v1060
      %v1062 = vpop.f32.mrb[0].mxu0
      %v1063 = vpop.f32.mrb[0].mxu0
      %v1064 = vadd.f32 %v397, %v1063
      %v1065 = vpop.f32.mrb[0].mxu0
      %1066 = vmatprep.mubr.bf16.mxu0 0
      %1067 = vmatmul.mubr.bf16.gmra.mrb[0].mxu0 %v771
      %v1068 = vpop.f32.mrb[0].mxu0
      %v1069 = vadd.f32 %v397, %v1068
      %v1070 = vpop.f32.mrb[0].mxu0
      %v1071 = vpop.f32.mrb[0].mxu0
      %v1072 = vadd.f32 %v397, %v1071
      %v1073 = vpop.f32.mrb[0].mxu0
      %1074 = vmatprep.mubr.bf16.mxu0 0
      %1075 = vmatmul.mubr.bf16.gmra.mrb[0].mxu0 %v774
      %v1076 = vpop.f32.mrb[0].mxu0
      %v1077 = vadd.f32 %v397, %v1076
      %v1078 = vpop.f32.mrb[0].mxu0
      %v1079 = vpop.f32.mrb[0].mxu0
      %v1080 = vadd.f32 %v397, %v1079
      %v1081 = vpop.f32.mrb[0].mxu0
      %1082 = vmatprep.mubr.bf16.mxu0 0
      %1083 = vmatmul.mubr.bf16.gmra.mrb[0].mxu0 %v777
      %v1084 = vpop.f32.mrb[0].mxu0
      %v1085 = vadd.f32 %v397, %v1084
      %v1086 = vpop.f32.mrb[0].mxu0
      %v1087 = vpop.f32.mrb[0].mxu0
      %v1088 = vadd.f32 %v397, %v1087
      %v1089 = vpop.f32.mrb[0].mxu0
      %1090 = vmatprep.mubr.bf16.mxu0 0
      %1091 = vmatmul.mubr.bf16.gmra.mrb[0].mxu0 %v780
      %v1092 = vpop.f32.mrb[0].mxu0
      %v1093 = vadd.f32 %v397, %v1092
      %v1094 = vpop.f32.mrb[0].mxu0
      %v1095 = vpop.f32.mrb[0].mxu0
      %v1096 = vadd.f32 %v397, %v1095
      %v1097 = vpop.f32.mrb[0].mxu0
      %1098 = vmatprep.mubr.bf16.mxu0 0
      %1099 = vmatmul.mubr.bf16.gmra.mrb[0].mxu0 %v783
      %v1100 = vpop.f32.mrb[0].mxu0
      %v1101 = vadd.f32 %v397, %v1100
      %v1102 = vpop.f32.mrb[0].mxu0
      %v1103 = vpop.f32.mrb[0].mxu0
      %v1104 = vadd.f32 %v397, %v1103
      %v1105 = vpop.f32.mrb[0].mxu0
      %1106 = vmatprep.mubr.bf16.mxu0 0
      %1107 = vmatmul.mubr.bf16.gmra.mrb[0].mxu0 %v786
      %v1108 = vpop.f32.mrb[0].mxu0
      %v1109 = vadd.f32 %v397, %v1108
      %v1110 = vpop.f32.mrb[0].mxu0
      %v1111 = vpop.f32.mrb[0].mxu0
      %v1112 = vadd.f32 %v397, %v1111
      %v1113 = vpop.f32.mrb[0].mxu0
      %1114 = vmatprep.mubr.bf16.mxu0 0
      %1115 = vmatmul.mubr.bf16.gmra.mrb[0].mxu0 %v789
      %v1116 = vpop.f32.mrb[0].mxu0
      %v1117 = vadd.f32 %v397, %v1116
      %v1118 = vpop.f32.mrb[0].mxu0
      %v1119 = vpop.f32.mrb[0].mxu0
      %v1120 = vadd.f32 %v397, %v1119
      %v1121 = vpop.f32.mrb[0].mxu0
      %1122 = vmatprep.mubr.bf16.mxu0 0
      %1123 = vmatmul.mubr.bf16.gmra.mrb[0].mxu0 %v792
      %v1124 = vpop.f32.mrb[0].mxu0
      %v1125 = vadd.f32 %v397, %v1124
      %v1126 = vpop.f32.mrb[0].mxu0
      %v1127 = vpop.f32.mrb[0].mxu0
      %v1128 = vadd.f32 %v397, %v1127
      %v1129 = vpop.f32.mrb[0].mxu0
      %1130 = vmatprep.mubr.bf16.mxu0 0
      %1131 = vmatmul.mubr.bf16.gmra.mrb[0].mxu0 %v795
      %v1132 = vpop.f32.mrb[0].mxu0
      %v1133 = vadd.f32 %v397, %v1132
      %v1134 = vpop.f32.mrb[0].mxu0
      %v1135 = vpop.f32.mrb[0].mxu0
      %v1136 = vadd.f32 %v397, %v1135
      %v1137 = vpop.f32.mrb[0].mxu0
      %1138 = vmatprep.mubr.bf16.mxu0 0
      %1139 = vmatmul.mubr.bf16.gmra.mrb[0].mxu0 %v798
      %v1140 = vpop.f32.mrb[0].mxu0
      %v1141 = vadd.f32 %v397, %v1140
      %v1142 = vpop.f32.mrb[0].mxu0
      %v1143 = vpop.f32.mrb[0].mxu0
      %v1144 = vadd.f32 %v397, %v1143
      %v1145 = vpop.f32.mrb[0].mxu0
      %1146 = vmatprep.mubr.bf16.mxu0 0
      %1147 = vmatmul.mubr.bf16.gmra.mrb[0].mxu0 %v801
      %v1148 = vpop.f32.mrb[0].mxu0
      %v1149 = vadd.f32 %v397, %v1148
      %v1150 = vpop.f32.mrb[0].mxu0
      %v1151 = vpop.f32.mrb[0].mxu0
      %v1152 = vadd.f32 %v397, %v1151
      %v1153 = vpop.f32.mrb[0].mxu0
      %1154 = vmatprep.mubr.bf16.mxu0 0
      %1155 = vmatmul.mubr.bf16.gmra.mrb[0].mxu0 %v804
      %v1156 = vpop.f32.mrb[0].mxu0
      %v1157 = vadd.f32 %v397, %v1156
      %v1158 = vpop.f32.mrb[0].mxu0
      %v1159 = vpop.f32.mrb[0].mxu0
      %v1160 = vadd.f32 %v397, %v1159
      %v1161 = vpop.f32.mrb[0].mxu0
      %1162 = vmatprep.mubr.bf16.mxu0 0
      %1163 = vmatmul.mubr.bf16.gmra.mrb[0].mxu0 %v807
      %v1164 = vpop.f32.mrb[0].mxu0
      %v1165 = vadd.f32 %v397, %v1164
      %v1166 = vpop.f32.mrb[0].mxu0
      %v1167 = vpop.f32.mrb[0].mxu0
      %v1168 = vadd.f32 %v397, %v1167
      %v1169 = vpop.f32.mrb[0].mxu0
      %1170 = vmatprep.mubr.bf16.mxu0 0
      %1171 = vmatmul.mubr.bf16.gmra.mrb[0].mxu0 %v810
      %v1172 = vpop.f32.mrb[0].mxu0
      %v1173 = vadd.f32 %v397, %v1172
      %v1174 = vpop.f32.mrb[0].mxu0
      %v1175 = vpop.f32.mrb[0].mxu0
      %v1176 = vadd.f32 %v397, %v1175
      %v1177 = vpop.f32.mrb[0].mxu0
      %1178 = vmatprep.mubr.bf16.mxu0 0
      %1179 = vmatmul.mubr.bf16.gmra.mrb[0].mxu0 %v813
      %v1180 = vpop.f32.mrb[0].mxu0
      %v1181 = vadd.f32 %v397, %v1180
      %v1182 = vpop.f32.mrb[0].mxu0
      %v1183 = vpop.f32.mrb[0].mxu0
      %v1184 = vadd.f32 %v397, %v1183
      %v1185 = vpop.f32.mrb[0].mxu0
      %1186 = vmatprep.mubr.bf16.mxu0 0
      %1187 = vmatmul.mubr.bf16.gmra.mrb[0].mxu0 %v816
      %v1188 = vpop.f32.mrb[0].mxu0
      %v1189 = vadd.f32 %v397, %v1188
      %v1190 = vpop.f32.mrb[0].mxu0
      %v1191 = vpop.f32.mrb[0].mxu0
      %v1192 = vadd.f32 %v397, %v1191
      %v1193 = vpop.f32.mrb[0].mxu0
      %1194 = vmatprep.mubr.bf16.mxu0 0
      %1195 = vmatmul.mubr.bf16.gmra.mrb[0].mxu0 %v819
      %v1196 = vpop.f32.mrb[0].mxu0
      %v1197 = vadd.f32 %v397, %v1196
      %v1198 = vpop.f32.mrb[0].mxu0
      %v1199 = vpop.f32.mrb[0].mxu0
      %v1200 = vadd.f32 %v397, %v1199
      %v1201 = vpop.f32.mrb[0].mxu0
      %1202 = vmatprep.mubr.bf16.mxu0 0
      %1203 = vmatmul.mubr.bf16.gmra.mrb[0].mxu0 %v822
      %v1204 = vpop.f32.mrb[0].mxu0
      %v1205 = vadd.f32 %v397, %v1204
      %v1206 = vpop.f32.mrb[0].mxu0
      %v1207 = vpop.f32.mrb[0].mxu0
      %v1208 = vadd.f32 %v397, %v1207
      %v1209 = vpop.f32.mrb[0].mxu0
      %1210 = vmatprep.mubr.bf16.mxu0 0
      %1211 = vmatmul.mubr.bf16.gmra.mrb[0].mxu0 %v825
      %v1212 = vpop.f32.mrb[0].mxu0
      %v1213 = vadd.f32 %v397, %v1212
      %v1214 = vpop.f32.mrb[0].mxu0
      %v1215 = vpop.f32.mrb[0].mxu0
      %v1216 = vadd.f32 %v397, %v1215
      %v1217 = vpop.f32.mrb[0].mxu0
      %1218 = vmatprep.mubr.bf16.mxu0 0
      %1219 = vmatmul.mubr.bf16.gmra.mrb[0].mxu0 %v828
      %v1220 = vpop.f32.mrb[0].mxu0
      %v1221 = vadd.f32 %v397, %v1220
      %v1222 = vpop.f32.mrb[0].mxu0
      %v1223 = vpop.f32.mrb[0].mxu0
      %v1224 = vadd.f32 %v397, %v1223
      %v1225 = vpop.f32.mrb[0].mxu0
      %1226 = vmatprep.mubr.bf16.mxu0 0
      %1227 = vmatmul.mubr.bf16.gmra.mrb[0].mxu0 %v831
      %v1228 = vpop.f32.mrb[0].mxu0
      %v1229 = vadd.f32 %v397, %v1228
      %v1230 = vpop.f32.mrb[0].mxu0
      %v1231 = vpop.f32.mrb[0].mxu0
      %v1232 = vadd.f32 %v397, %v1231
      %v1233 = vpop.f32.mrb[0].mxu0
      %1234 = vmatprep.mubr.bf16.mxu0 0
      %1235 = vmatmul.mubr.bf16.gmra.mrb[0].mxu0 %v834
      %v1236 = vpop.f32.mrb[0].mxu0
      %v1237 = vadd.f32 %v397, %v1236
      %v1238 = vpop.f32.mrb[0].mxu0
      %v1239 = vpop.f32.mrb[0].mxu0
      %v1240 = vadd.f32 %v397, %v1239
      %v1241 = vpop.f32.mrb[0].mxu0
      %1242 = vmatprep.mubr.bf16.mxu0 0
      %1243 = vmatmul.mubr.bf16.gmra.mrb[0].mxu0 %v837
      %v1244 = vpop.f32.mrb[0].mxu0
      %v1245 = vadd.f32 %v397, %v1244
      %v1246 = vpop.f32.mrb[0].mxu0
      %v1247 = vpop.f32.mrb[0].mxu0
      %v1248 = vadd.f32 %v397, %v1247
      %v1249 = vpop.f32.mrb[0].mxu0
      %1250 = vmatprep.mubr.bf16.mxu0 0
      %1251 = vmatmul.mubr.bf16.gmra.mrb[0].mxu0 %v840
      %v1252 = vpop.f32.mrb[0].mxu0
      %v1253 = vadd.f32 %v397, %v1252
      %v1254 = vpop.f32.mrb[0].mxu0
      %v1255 = vpop.f32.mrb[0].mxu0
      %v1256 = vadd.f32 %v397, %v1255
      %v1257 = vpop.f32.mrb[0].mxu0
      %1258 = vmatprep.mubr.bf16.mxu0 0
      %1259 = vmatmul.mubr.bf16.gmra.mrb[0].mxu0 %v843
      %v1260 = vpop.f32.mrb[0].mxu0
      %v1261 = vadd.f32 %v397, %v1260
      %v1262 = vpop.f32.mrb[0].mxu0
      %v1263 = vpop.f32.mrb[0].mxu0
      %v1264 = vadd.f32 %v397, %v1263
      %v1265 = vpop.f32.mrb[0].mxu0
      %1266 = vmatprep.mubr.bf16.mxu0 0
      %1267 = vmatmul.mubr.bf16.gmra.mrb[0].mxu0 %v846
      %v1268 = vpop.f32.mrb[0].mxu0
      %v1269 = vadd.f32 %v397, %v1268
      %v1270 = vpop.f32.mrb[0].mxu0
      %v1271 = vpop.f32.mrb[0].mxu0
      %v1272 = vadd.f32 %v397, %v1271
      %v1273 = vpop.f32.mrb[0].mxu0
      %1274 = vmatprep.mubr.bf16.mxu0 0
      %1275 = vmatmul.mubr.bf16.gmra.mrb[0].mxu0 %v849
      %v1276 = vpop.f32.mrb[0].mxu0
      %v1277 = vadd.f32 %v397, %v1276
      %v1278 = vpop.f32.mrb[0].mxu0
      %v1279 = vpop.f32.mrb[0].mxu0
      %v1280 = vadd.f32 %v397, %v1279
      %v1281 = vpop.f32.mrb[0].mxu0
      %1282 = vmatprep.mubr.bf16.mxu0 0
      %1283 = vmatmul.mubr.bf16.gmra.mrb[0].mxu0 %v852
      %v1284 = vpop.f32.mrb[0].mxu0
      %v1285 = vadd.f32 %v397, %v1284
      %v1286 = vpop.f32.mrb[0].mxu0
      %v1287 = vpop.f32.mrb[0].mxu0
      %v1288 = vadd.f32 %v397, %v1287
      %v1289 = vpop.f32.mrb[0].mxu0
      %1290 = vmatprep.mubr.bf16.mxu0 0
      %1291 = vmatmul.mubr.bf16.gmra.mrb[0].mxu0 %v855
      %v1292 = vpop.f32.mrb[0].mxu0
      %v1293 = vadd.f32 %v397, %v1292
      %v1294 = vpop.f32.mrb[0].mxu0
      %v1295 = vpop.f32.mrb[0].mxu0
      %v1296 = vadd.f32 %v397, %v1295
      %v1297 = vpop.f32.mrb[0].mxu0
      %1298 = vmatprep.mubr.bf16.mxu0 0
      %1299 = vmatmul.mubr.bf16.gmra.mrb[0].mxu0 %v858
      %v1300 = vpop.f32.mrb[0].mxu0
      %v1301 = vadd.f32 %v397, %v1300
      %v1302 = vpop.f32.mrb[0].mxu0
      %v1303 = vpop.f32.mrb[0].mxu0
      %v1304 = vadd.f32 %v397, %v1303
      %v1305 = vpop.f32.mrb[0].mxu0
      %1306 = vmatprep.mubr.bf16.mxu0 0
      %1307 = vmatmul.mubr.bf16.gmra.mrb[0].mxu0 %v861
      %v1308 = vpop.f32.mrb[0].mxu0
      %v1309 = vadd.f32 %v397, %v1308
      %v1310 = vpop.f32.mrb[0].mxu0
      %v1311 = vpop.f32.mrb[0].mxu0
      %v1312 = vadd.f32 %v397, %v1311
      %v1313 = vpop.f32.mrb[0].mxu0
      %1314 = vmatprep.mubr.bf16.mxu0 0
      %1315 = vmatmul.mubr.bf16.gmra.mrb[0].mxu0 %v864
      %v1316 = vpop.f32.mrb[0].mxu0
      %v1317 = vadd.f32 %v397, %v1316
      %v1318 = vpop.f32.mrb[0].mxu0
      %v1319 = vpop.f32.mrb[0].mxu0
      %v1320 = vadd.f32 %v397, %v1319
      %v1321 = vpop.f32.mrb[0].mxu0
      %1322 = vmatprep.mubr.bf16.mxu0 0
      %1323 = vmatmul.mubr.bf16.gmra.mrb[0].mxu0 %v867
      %v1324 = vpop.f32.mrb[0].mxu0
      %v1325 = vadd.f32 %v397, %v1324
      %v1326 = vpop.f32.mrb[0].mxu0
      %v1327 = vpop.f32.mrb[0].mxu0
      %v1328 = vadd.f32 %v397, %v1327
      %v1329 = vpop.f32.mrb[0].mxu0
      %1330 = vmatprep.mubr.bf16.mxu0 0
      %1331 = vmatmul.mubr.bf16.gmra.mrb[0].mxu0 %v870
      %v1332 = vpop.f32.mrb[0].mxu0
      %v1333 = vadd.f32 %v397, %v1332
      %v1334 = vpop.f32.mrb[0].mxu0
      %v1335 = vpop.f32.mrb[0].mxu0
      %v1336 = vadd.f32 %v397, %v1335
      %v1337 = vpop.f32.mrb[0].mxu0
      %1338 = vmatprep.mubr.bf16.mxu0 0
      %1339 = vmatmul.mubr.bf16.gmra.mrb[0].mxu0 %v873
      %v1340 = vpop.f32.mrb[0].mxu0
      %v1341 = vadd.f32 %v397, %v1340
      %v1342 = vpop.f32.mrb[0].mxu0
      %v1343 = vpop.f32.mrb[0].mxu0
      %v1344 = vadd.f32 %v397, %v1343
      %v1345 = vpop.f32.mrb[0].mxu0
      %1346 = vmatprep.mubr.bf16.mxu0 0
      %1347 = vmatmul.mubr.bf16.gmra.mrb[0].mxu0 %v876
      %v1348 = vpop.f32.mrb[0].mxu0
      %v1349 = vadd.f32 %v397, %v1348
      %v1350 = vpop.f32.mrb[0].mxu0
      %v1351 = vpop.f32.mrb[0].mxu0
      %v1352 = vadd.f32 %v397, %v1351
      %v1353 = vpop.f32.mrb[0].mxu0
      %1354 = vmatprep.mubr.bf16.mxu0 0
      %1355 = vmatmul.mubr.bf16.gmra.mrb[0].mxu0 %v879
      %v1356 = vpop.f32.mrb[0].mxu0
      %v1357 = vadd.f32 %v397, %v1356
      %v1358 = vpop.f32.mrb[0].mxu0
      %v1359 = vpop.f32.mrb[0].mxu0
      %v1360 = vadd.f32 %v397, %v1359
      %v1361 = vpop.f32.mrb[0].mxu0
      %1362 = vmatprep.mubr.bf16.mxu0 0
      %1363 = vmatmul.mubr.bf16.gmra.mrb[0].mxu0 %v882
      %v1364 = vpop.f32.mrb[0].mxu0
      %v1365 = vadd.f32 %v397, %v1364
      %v1366 = vpop.f32.mrb[0].mxu0
      %v1367 = vpop.f32.mrb[0].mxu0
      %v1368 = vadd.f32 %v397, %v1367
      %v1369 = vpop.f32.mrb[0].mxu0
      %1370 = vmatprep.mubr.bf16.mxu0 0
      %1371 = vmatmul.mubr.bf16.gmra.mrb[0].mxu0 %v885
      %v1372 = vpop.f32.mrb[0].mxu0
      %v1373 = vadd.f32 %v397, %v1372
      %v1374 = vpop.f32.mrb[0].mxu0
      %v1375 = vpop.f32.mrb[0].mxu0
      %v1376 = vadd.f32 %v397, %v1375
      %v1377 = vpop.f32.mrb[0].mxu0
      %1378 = vmatprep.mubr.bf16.mxu0 0
      %1379 = vmatmul.mubr.bf16.gmra.mrb[0].mxu0 %v888
      %v1380 = vpop.f32.mrb[0].mxu0
      %v1381 = vadd.f32 %v397, %v1380
      %v1382 = vpop.f32.mrb[0].mxu0
      %v1383 = vpop.f32.mrb[0].mxu0
      %v1384 = vadd.f32 %v397, %v1383
      %v1385 = vpop.f32.mrb[0].mxu0
      %1386 = vmatprep.mubr.bf16.mxu0 0
      %1387 = vmatmul.mubr.bf16.gmra.mrb[0].mxu0 %v891
      %v1388 = vpop.f32.mrb[0].mxu0
      %v1389 = vadd.f32 %v397, %v1388
      %v1390 = vpop.f32.mrb[0].mxu0
      %v1391 = vpop.f32.mrb[0].mxu0
      %v1392 = vadd.f32 %v397, %v1391
      %v1393 = vpop.f32.mrb[0].mxu0
      %1394 = vmatprep.mubr.bf16.mxu0 0
      %1395 = vmatmul.mubr.bf16.gmra.mrb[0].mxu0 %v894
      %v1396 = vpop.f32.mrb[0].mxu0
      %v1397 = vadd.f32 %v397, %v1396
      %v1398 = vpop.f32.mrb[0].mxu0
      %v1399 = vpop.f32.mrb[0].mxu0
      %v1400 = vadd.f32 %v397, %v1399
      %v1401 = vpop.f32.mrb[0].mxu0
      %1402 = vmatprep.mubr.bf16.mxu0 0
      %1403 = vmatmul.mubr.bf16.gmra.mrb[0].mxu0 %v897
      %v1404 = vpop.f32.mrb[0].mxu0
      %v1405 = vadd.f32 %v397, %v1404
      %v1406 = vpop.f32.mrb[0].mxu0
      %v1407 = vpop.f32.mrb[0].mxu0
      %v1408 = vadd.f32 %v397, %v1407
      %v1409 = vpop.f32.mrb[0].mxu0
      %1410 = vmatprep.mubr.bf16.mxu0 0
      %1411 = vmatmul.mubr.bf16.gmra.mrb[0].mxu0 %v900
      %v1412 = vpop.f32.mrb[0].mxu0
      %v1413 = vadd.f32 %v397, %v1412
      %v1414 = vpop.f32.mrb[0].mxu0
      %v1415 = vpop.f32.mrb[0].mxu0
      %v1416 = vadd.f32 %v397, %v1415
      %v1417 = vpop.f32.mrb[0].mxu0
      %1418 = vmatprep.mubr.bf16.mxu0 0
      %1419 = vmatmul.mubr.bf16.gmra.mrb[0].mxu0 %v903
      %v1420 = vpop.f32.mrb[0].mxu0
      %v1421 = vadd.f32 %v397, %v1420
      %v1422 = vpop.f32.mrb[0].mxu0
      %v1423 = vpop.f32.mrb[0].mxu0
      %v1424 = vadd.f32 %v397, %v1423
      %v1425 = vpop.f32.mrb[0].mxu0
      %1426 = vmatprep.mubr.bf16.mxu0 0
      %1427 = vmatmul.mubr.bf16.gmra.mrb[0].mxu0 %v906
      %v1428 = vpop.f32.mrb[0].mxu0
      %v1429 = vadd.f32 %v397, %v1428
      %v1430 = vpop.f32.mrb[0].mxu0
      %v1431 = vpop.f32.mrb[0].mxu0
      %v1432 = vadd.f32 %v397, %v1431
      %v1433 = vpop.f32.mrb[0].mxu0
      %1434 = vmatprep.mubr.bf16.mxu0 0
      %1435 = vmatmul.mubr.bf16.gmra.mrb[0].mxu0 %v909
      %v1436 = vpop.f32.mrb[0].mxu0
      %v1437 = vadd.f32 %v397, %v1436
      %v1438 = vpop.f32.mrb[0].mxu0
      %v1439 = vpop.f32.mrb[0].mxu0
      %v1440 = vadd.f32 %v397, %v1439
      %v1441 = vpop.f32.mrb[0].mxu0
      %1442 = vmatprep.mubr.bf16.mxu0 0
      %1443 = vmatmul.mubr.bf16.gmra.mrb[0].mxu0 %v912
      %v1444 = vpop.f32.mrb[0].mxu0
      %v1445 = vadd.f32 %v397, %v1444
      %v1446 = vpop.f32.mrb[0].mxu0
      %v1447 = vpop.f32.mrb[0].mxu0
      %v1448 = vadd.f32 %v397, %v1447
      %v1449 = vpop.f32.mrb[0].mxu0
      %1450 = vmatprep.mubr.bf16.mxu0 0
      %1451 = vmatmul.mubr.bf16.gmra.mrb[0].mxu0 %v915
      %v1452 = vpop.f32.mrb[0].mxu0
      %v1453 = vadd.f32 %v397, %v1452
      %v1454 = vpop.f32.mrb[0].mxu0
      %v1455 = vpop.f32.mrb[0].mxu0
      %v1456 = vadd.f32 %v397, %v1455
      %v1457 = vpop.f32.mrb[0].mxu0
      %1458 = vmatprep.mubr.bf16.mxu0 0
      %1459 = vmatmul.mubr.bf16.gmra.mrb[0].mxu0 %v918
      %v1460 = vpop.f32.mrb[0].mxu0
      %v1461 = vadd.f32 %v397, %v1460
      %v1462 = vpop.f32.mrb[0].mxu0
      %v1463 = vpop.f32.mrb[0].mxu0
      %v1464 = vadd.f32 %v397, %v1463
      %v1465 = vpop.f32.mrb[0].mxu0
      %1466 = vmatprep.mubr.bf16.mxu0 0
      %1467 = vmatmul.mubr.bf16.gmra.mrb[0].mxu0 %v921
      %v1468 = vpop.f32.mrb[0].mxu0
      %v1469 = vadd.f32 %v397, %v1468
      %v1470 = vpop.f32.mrb[0].mxu0
      %v1471 = vpop.f32.mrb[0].mxu0
      %v1472 = vadd.f32 %v397, %v1471
      %v1473 = vpop.f32.mrb[0].mxu0
      %1474 = vdwg.mxu0
      %v1475 = vmax.f32 %v965, 0.0
      %v1476 = vmax.f32 %v968, 0.0
      %v1477 = vmax.f32 %v973, 0.0
      %v1478 = vmax.f32 %v976, 0.0
      %v1479 = vmax.f32 %v981, 0.0
      %v1480 = vmax.f32 %v984, 0.0
      %v1481 = vmax.f32 %v989, 0.0
      %v1482 = vmax.f32 %v992, 0.0
      %v1483 = vmax.f32 %v997, 0.0
      %v1484 = vmax.f32 %v1000, 0.0
      %v1485 = vmax.f32 %v1005, 0.0
      %v1486 = vmax.f32 %v1008, 0.0
      %v1487 = vmax.f32 %v1013, 0.0
      %v1488 = vmax.f32 %v1016, 0.0
      %v1489 = vmax.f32 %v1021, 0.0
      %v1490 = vmax.f32 %v1024, 0.0
      %v1491 = vmax.f32 %v1029, 0.0
      %v1492 = vmax.f32 %v1032, 0.0
      %v1493 = vmax.f32 %v1037, 0.0
      %v1494 = vmax.f32 %v1040, 0.0
      %v1495 = vmax.f32 %v1045, 0.0
      %v1496 = vmax.f32 %v1048, 0.0
      %v1497 = vmax.f32 %v1053, 0.0
      %v1498 = vmax.f32 %v1056, 0.0
      %v1499 = vmax.f32 %v1061, 0.0
      %v1500 = vmax.f32 %v1064, 0.0
      %v1501 = vmax.f32 %v1069, 0.0
      %v1502 = vmax.f32 %v1072, 0.0
      %v1503 = vmax.f32 %v1077, 0.0
      %v1504 = vmax.f32 %v1080, 0.0
      %v1505 = vmax.f32 %v1085, 0.0
      %v1506 = vmax.f32 %v1088, 0.0
      %v1507 = vmax.f32 %v1093, 0.0
      %v1508 = vmax.f32 %v1096, 0.0
      %v1509 = vmax.f32 %v1101, 0.0
      %v1510 = vmax.f32 %v1104, 0.0
      %v1511 = vmax.f32 %v1109, 0.0
      %v1512 = vmax.f32 %v1112, 0.0
      %v1513 = vmax.f32 %v1117, 0.0
      %v1514 = vmax.f32 %v1120, 0.0
      %v1515 = vmax.f32 %v1125, 0.0
      %v1516 = vmax.f32 %v1128, 0.0
      %v1517 = vmax.f32 %v1133, 0.0
      %v1518 = vmax.f32 %v1136, 0.0
      %v1519 = vmax.f32 %v1141, 0.0
      %v1520 = vmax.f32 %v1144, 0.0
      %v1521 = vmax.f32 %v1149, 0.0
      %v1522 = vmax.f32 %v1152, 0.0
      %v1523 = vmax.f32 %v1157, 0.0
      %v1524 = vmax.f32 %v1160, 0.0
      %v1525 = vmax.f32 %v1165, 0.0
      %v1526 = vmax.f32 %v1168, 0.0
      %v1527 = vmax.f32 %v1173, 0.0
      %v1528 = vmax.f32 %v1176, 0.0
      %v1529 = vmax.f32 %v1181, 0.0
      %v1530 = vmax.f32 %v1184, 0.0
      %v1531 = vmax.f32 %v1189, 0.0
      %v1532 = vmax.f32 %v1192, 0.0
      %v1533 = vmax.f32 %v1197, 0.0
      %v1534 = vmax.f32 %v1200, 0.0
      %v1535 = vmax.f32 %v1205, 0.0
      %v1536 = vmax.f32 %v1208, 0.0
      %v1537 = vmax.f32 %v1213, 0.0
      %v1538 = vmax.f32 %v1216, 0.0
      %v1539 = vmax.f32 %v1221, 0.0
      %v1540 = vmax.f32 %v1224, 0.0
      %v1541 = vmax.f32 %v1229, 0.0
      %v1542 = vmax.f32 %v1232, 0.0
      %v1543 = vmax.f32 %v1237, 0.0
      %v1544 = vmax.f32 %v1240, 0.0
      %v1545 = vmax.f32 %v1245, 0.0
      %v1546 = vmax.f32 %v1248, 0.0
      %v1547 = vmax.f32 %v1253, 0.0
      %v1548 = vmax.f32 %v1256, 0.0
      %v1549 = vmax.f32 %v1261, 0.0
      %v1550 = vmax.f32 %v1264, 0.0
      %v1551 = vmax.f32 %v1269, 0.0
      %v1552 = vmax.f32 %v1272, 0.0
      %v1553 = vmax.f32 %v1277, 0.0
      %v1554 = vmax.f32 %v1280, 0.0
      %v1555 = vmax.f32 %v1285, 0.0
      %v1556 = vmax.f32 %v1288, 0.0
      %v1557 = vmax.f32 %v1293, 0.0
      %v1558 = vmax.f32 %v1296, 0.0
      %v1559 = vmax.f32 %v1301, 0.0
      %v1560 = vmax.f32 %v1304, 0.0
      %v1561 = vmax.f32 %v1309, 0.0
      %v1562 = vmax.f32 %v1312, 0.0
      %v1563 = vmax.f32 %v1317, 0.0
      %v1564 = vmax.f32 %v1320, 0.0
      %v1565 = vmax.f32 %v1325, 0.0
      %v1566 = vmax.f32 %v1328, 0.0
      %v1567 = vmax.f32 %v1333, 0.0
      %v1568 = vmax.f32 %v1336, 0.0
      %v1569 = vmax.f32 %v1341, 0.0
      %v1570 = vmax.f32 %v1344, 0.0
      %v1571 = vmax.f32 %v1349, 0.0
      %v1572 = vmax.f32 %v1352, 0.0
      %v1573 = vmax.f32 %v1357, 0.0
      %v1574 = vmax.f32 %v1360, 0.0
      %v1575 = vmax.f32 %v1365, 0.0
      %v1576 = vmax.f32 %v1368, 0.0
      %v1577 = vmax.f32 %v1373, 0.0
      %v1578 = vmax.f32 %v1376, 0.0
      %v1579 = vmax.f32 %v1381, 0.0
      %v1580 = vmax.f32 %v1384, 0.0
      %v1581 = vmax.f32 %v1389, 0.0
      %v1582 = vmax.f32 %v1392, 0.0
      %v1583 = vmax.f32 %v1397, 0.0
      %v1584 = vmax.f32 %v1400, 0.0
      %v1585 = vmax.f32 %v1405, 0.0
      %v1586 = vmax.f32 %v1408, 0.0
      %v1587 = vmax.f32 %v1413, 0.0
      %v1588 = vmax.f32 %v1416, 0.0
      %v1589 = vmax.f32 %v1421, 0.0
      %v1590 = vmax.f32 %v1424, 0.0
      %v1591 = vmax.f32 %v1429, 0.0
      %v1592 = vmax.f32 %v1432, 0.0
      %v1593 = vmax.f32 %v1437, 0.0
      %v1594 = vmax.f32 %v1440, 0.0
      %v1595 = vmax.f32 %v1445, 0.0
      %v1596 = vmax.f32 %v1448, 0.0
      %v1597 = vmax.f32 %v1453, 0.0
      %v1598 = vmax.f32 %v1456, 0.0
      %v1599 = vmax.f32 %v1461, 0.0
      %v1600 = vmax.f32 %v1464, 0.0
      %v1601 = vmax.f32 %v1469, 0.0
      %v1602 = vmax.f32 %v1472, 0.0
      %vm1603 = vcmask 64512
      %1604 = vst.msk [vmem:[%s257] sm:$0xff] %vm1603, %v1475
      %1605 = vst.msk [vmem:[%s257 + $0x8] sm:$0xff] %vm1603, %v1476
      %1606 = vst.msk [vmem:[%s257 + $0x10] sm:$0xff] %vm1603, %v1477
      %1607 = vst.msk [vmem:[%s257 + $0x18] sm:$0xff] %vm1603, %v1478
      %1608 = vst.msk [vmem:[%s257 + $0x20] sm:$0xff] %vm1603, %v1479
      %1609 = vst.msk [vmem:[%s257 + $0x28] sm:$0xff] %vm1603, %v1480
      %1610 = vst.msk [vmem:[%s257 + $0x30] sm:$0xff] %vm1603, %v1481
      %1611 = vst.msk [vmem:[%s257 + $0x38] sm:$0xff] %vm1603, %v1482
      %1612 = vst.msk [vmem:[%s257 + $0x40] sm:$0xff] %vm1603, %v1483
      %1613 = vst.msk [vmem:[%s257 + $0x48] sm:$0xff] %vm1603, %v1484
      %1614 = vst.msk [vmem:[%s257 + $0x50] sm:$0xff] %vm1603, %v1485
      %1615 = vst.msk [vmem:[%s257 + $0x58] sm:$0xff] %vm1603, %v1486
      %1616 = vst.msk [vmem:[%s257 + $0x60] sm:$0xff] %vm1603, %v1487
      %1617 = vst.msk [vmem:[%s257 + $0x68] sm:$0xff] %vm1603, %v1488
      %1618 = vst.msk [vmem:[%s257 + $0x70] sm:$0xff] %vm1603, %v1489
      %1619 = vst.msk [vmem:[%s257 + $0x78] sm:$0xff] %vm1603, %v1490
      %1620 = vst.msk [vmem:[%s257 + $0x80] sm:$0xff] %vm1603, %v1491
      %1621 = vst.msk [vmem:[%s257 + $0x88] sm:$0xff] %vm1603, %v1492
      %1622 = vst.msk [vmem:[%s257 + $0x90] sm:$0xff] %vm1603, %v1493
      %1623 = vst.msk [vmem:[%s257 + $0x98] sm:$0xff] %vm1603, %v1494
      %1624 = vst.msk [vmem:[%s257 + $0xa0] sm:$0xff] %vm1603, %v1495
      %1625 = vst.msk [vmem:[%s257 + $0xa8] sm:$0xff] %vm1603, %v1496
      %1626 = vst.msk [vmem:[%s257 + $0xb0] sm:$0xff] %vm1603, %v1497
      %1627 = vst.msk [vmem:[%s257 + $0xb8] sm:$0xff] %vm1603, %v1498
      %1628 = vst.msk [vmem:[%s257 + $0xc0] sm:$0xff] %vm1603, %v1499
      %1629 = vst.msk [vmem:[%s257 + $0xc8] sm:$0xff] %vm1603, %v1500
      %1630 = vst.msk [vmem:[%s257 + $0xd0] sm:$0xff] %vm1603, %v1501
      %1631 = vst.msk [vmem:[%s257 + $0xd8] sm:$0xff] %vm1603, %v1502
      %1632 = vst.msk [vmem:[%s257 + $0xe0] sm:$0xff] %vm1603, %v1503
      %1633 = vst.msk [vmem:[%s257 + $0xe8] sm:$0xff] %vm1603, %v1504
      %1634 = vst.msk [vmem:[%s257 + $0xf0] sm:$0xff] %vm1603, %v1505
      %1635 = vst.msk [vmem:[%s257 + $0xf8] sm:$0xff] %vm1603, %v1506
      %1636 = vst.msk [vmem:[%s257 + $0x100] sm:$0xff] %vm1603, %v1507
      %1637 = vst.msk [vmem:[%s257 + $0x108] sm:$0xff] %vm1603, %v1508
      %1638 = vst.msk [vmem:[%s257 + $0x110] sm:$0xff] %vm1603, %v1509
      %1639 = vst.msk [vmem:[%s257 + $0x118] sm:$0xff] %vm1603, %v1510
      %1640 = vst.msk [vmem:[%s257 + $0x120] sm:$0xff] %vm1603, %v1511
      %1641 = vst.msk [vmem:[%s257 + $0x128] sm:$0xff] %vm1603, %v1512
      %1642 = vst.msk [vmem:[%s257 + $0x130] sm:$0xff] %vm1603, %v1513
      %1643 = vst.msk [vmem:[%s257 + $0x138] sm:$0xff] %vm1603, %v1514
      %1644 = vst.msk [vmem:[%s257 + $0x140] sm:$0xff] %vm1603, %v1515
      %1645 = vst.msk [vmem:[%s257 + $0x148] sm:$0xff] %vm1603, %v1516
      %1646 = vst.msk [vmem:[%s257 + $0x150] sm:$0xff] %vm1603, %v1517
      %1647 = vst.msk [vmem:[%s257 + $0x158] sm:$0xff] %vm1603, %v1518
      %1648 = vst.msk [vmem:[%s257 + $0x160] sm:$0xff] %vm1603, %v1519
      %1649 = vst.msk [vmem:[%s257 + $0x168] sm:$0xff] %vm1603, %v1520
      %1650 = vst.msk [vmem:[%s257 + $0x170] sm:$0xff] %vm1603, %v1521
      %1651 = vst.msk [vmem:[%s257 + $0x178] sm:$0xff] %vm1603, %v1522
      %1652 = vst.msk [vmem:[%s257 + $0x180] sm:$0xff] %vm1603, %v1523
      %1653 = vst.msk [vmem:[%s257 + $0x188] sm:$0xff] %vm1603, %v1524
      %1654 = vst.msk [vmem:[%s257 + $0x190] sm:$0xff] %vm1603, %v1525
      %1655 = vst.msk [vmem:[%s257 + $0x198] sm:$0xff] %vm1603, %v1526
      %1656 = vst.msk [vmem:[%s257 + $0x1a0] sm:$0xff] %vm1603, %v1527
      %1657 = vst.msk [vmem:[%s257 + $0x1a8] sm:$0xff] %vm1603, %v1528
      %1658 = vst.msk [vmem:[%s257 + $0x1b0] sm:$0xff] %vm1603, %v1529
      %1659 = vst.msk [vmem:[%s257 + $0x1b8] sm:$0xff] %vm1603, %v1530
      %1660 = vst.msk [vmem:[%s257 + $0x1c0] sm:$0xff] %vm1603, %v1531
      %1661 = vst.msk [vmem:[%s257 + $0x1c8] sm:$0xff] %vm1603, %v1532
      %1662 = vst.msk [vmem:[%s257 + $0x1d0] sm:$0xff] %vm1603, %v1533
      %1663 = vst.msk [vmem:[%s257 + $0x1d8] sm:$0xff] %vm1603, %v1534
      %1664 = vst.msk [vmem:[%s257 + $0x1e0] sm:$0xff] %vm1603, %v1535
      %1665 = vst.msk [vmem:[%s257 + $0x1e8] sm:$0xff] %vm1603, %v1536
      %1666 = vst.msk [vmem:[%s257 + $0x1f0] sm:$0xff] %vm1603, %v1537
      %1667 = vst.msk [vmem:[%s257 + $0x1f8] sm:$0xff] %vm1603, %v1538
      %1668 = vst.msk [vmem:[%s257 + $0x200] sm:$0xff] %vm1603, %v1539
      %1669 = vst.msk [vmem:[%s257 + $0x208] sm:$0xff] %vm1603, %v1540
      %1670 = vst.msk [vmem:[%s257 + $0x210] sm:$0xff] %vm1603, %v1541
      %1671 = vst.msk [vmem:[%s257 + $0x218] sm:$0xff] %vm1603, %v1542
      %1672 = vst.msk [vmem:[%s257 + $0x220] sm:$0xff] %vm1603, %v1543
      %1673 = vst.msk [vmem:[%s257 + $0x228] sm:$0xff] %vm1603, %v1544
      %1674 = vst.msk [vmem:[%s257 + $0x230] sm:$0xff] %vm1603, %v1545
      %1675 = vst.msk [vmem:[%s257 + $0x238] sm:$0xff] %vm1603, %v1546
      %1676 = vst.msk [vmem:[%s257 + $0x240] sm:$0xff] %vm1603, %v1547
      %1677 = vst.msk [vmem:[%s257 + $0x248] sm:$0xff] %vm1603, %v1548
      %1678 = vst.msk [vmem:[%s257 + $0x250] sm:$0xff] %vm1603, %v1549
      %1679 = vst.msk [vmem:[%s257 + $0x258] sm:$0xff] %vm1603, %v1550
      %1680 = vst.msk [vmem:[%s257 + $0x260] sm:$0xff] %vm1603, %v1551
      %1681 = vst.msk [vmem:[%s257 + $0x268] sm:$0xff] %vm1603, %v1552
      %1682 = vst.msk [vmem:[%s257 + $0x270] sm:$0xff] %vm1603, %v1553
      %1683 = vst.msk [vmem:[%s257 + $0x278] sm:$0xff] %vm1603, %v1554
      %1684 = vst.msk [vmem:[%s257 + $0x280] sm:$0xff] %vm1603, %v1555
      %1685 = vst.msk [vmem:[%s257 + $0x288] sm:$0xff] %vm1603, %v1556
      %1686 = vst.msk [vmem:[%s257 + $0x290] sm:$0xff] %vm1603, %v1557
      %1687 = vst.msk [vmem:[%s257 + $0x298] sm:$0xff] %vm1603, %v1558
      %1688 = vst.msk [vmem:[%s257 + $0x2a0] sm:$0xff] %vm1603, %v1559
      %1689 = vst.msk [vmem:[%s257 + $0x2a8] sm:$0xff] %vm1603, %v1560
      %1690 = vst.msk [vmem:[%s257 + $0x2b0] sm:$0xff] %vm1603, %v1561
      %1691 = vst.msk [vmem:[%s257 + $0x2b8] sm:$0xff] %vm1603, %v1562
      %1692 = vst.msk [vmem:[%s257 + $0x2c0] sm:$0xff] %vm1603, %v1563
      %1693 = vst.msk [vmem:[%s257 + $0x2c8] sm:$0xff] %vm1603, %v1564
      %1694 = vst.msk [vmem:[%s257 + $0x2d0] sm:$0xff] %vm1603, %v1565
      %1695 = vst.msk [vmem:[%s257 + $0x2d8] sm:$0xff] %vm1603, %v1566
      %1696 = vst.msk [vmem:[%s257 + $0x2e0] sm:$0xff] %vm1603, %v1567
      %1697 = vst.msk [vmem:[%s257 + $0x2e8] sm:$0xff] %vm1603, %v1568
      %1698 = vst.msk [vmem:[%s257 + $0x2f0] sm:$0xff] %vm1603, %v1569
      %1699 = vst.msk [vmem:[%s257 + $0x2f8] sm:$0xff] %vm1603, %v1570
      %1700 = vst.msk [vmem:[%s257 + $0x300] sm:$0xff] %vm1603, %v1571
      %1701 = vst.msk [vmem:[%s257 + $0x308] sm:$0xff] %vm1603, %v1572
      %1702 = vst.msk [vmem:[%s257 + $0x310] sm:$0xff] %vm1603, %v1573
      %1703 = vst.msk [vmem:[%s257 + $0x318] sm:$0xff] %vm1603, %v1574
      %1704 = vst.msk [vmem:[%s257 + $0x320] sm:$0xff] %vm1603, %v1575
      %1705 = vst.msk [vmem:[%s257 + $0x328] sm:$0xff] %vm1603, %v1576
      %1706 = vst.msk [vmem:[%s257 + $0x330] sm:$0xff] %vm1603, %v1577
      %1707 = vst.msk [vmem:[%s257 + $0x338] sm:$0xff] %vm1603, %v1578
      %1708 = vst.msk [vmem:[%s257 + $0x340] sm:$0xff] %vm1603, %v1579
      %1709 = vst.msk [vmem:[%s257 + $0x348] sm:$0xff] %vm1603, %v1580
      %1710 = vst.msk [vmem:[%s257 + $0x350] sm:$0xff] %vm1603, %v1581
      %1711 = vst.msk [vmem:[%s257 + $0x358] sm:$0xff] %vm1603, %v1582
      %1712 = vst.msk [vmem:[%s257 + $0x360] sm:$0xff] %vm1603, %v1583
      %1713 = vst.msk [vmem:[%s257 + $0x368] sm:$0xff] %vm1603, %v1584
      %1714 = vst.msk [vmem:[%s257 + $0x370] sm:$0xff] %vm1603, %v1585
      %1715 = vst.msk [vmem:[%s257 + $0x378] sm:$0xff] %vm1603, %v1586
      %1716 = vst.msk [vmem:[%s257 + $0x380] sm:$0xff] %vm1603, %v1587
      %1717 = vst.msk [vmem:[%s257 + $0x388] sm:$0xff] %vm1603, %v1588
      %1718 = vst.msk [vmem:[%s257 + $0x390] sm:$0xff] %vm1603, %v1589
      %1719 = vst.msk [vmem:[%s257 + $0x398] sm:$0xff] %vm1603, %v1590
      %1720 = vst.msk [vmem:[%s257 + $0x3a0] sm:$0xff] %vm1603, %v1591
      %1721 = vst.msk [vmem:[%s257 + $0x3a8] sm:$0xff] %vm1603, %v1592
      %1722 = vst.msk [vmem:[%s257 + $0x3b0] sm:$0xff] %vm1603, %v1593
      %1723 = vst.msk [vmem:[%s257 + $0x3b8] sm:$0xff] %vm1603, %v1594
      %1724 = vst.msk [vmem:[%s257 + $0x3c0] sm:$0xff] %vm1603, %v1595
      %1725 = vst.msk [vmem:[%s257 + $0x3c8] sm:$0xff] %vm1603, %v1596
      %1726 = vst.msk [vmem:[%s257 + $0x3d0] sm:$0xff] %vm1603, %v1597
      %1727 = vst.msk [vmem:[%s257 + $0x3d8] sm:$0xff] %vm1603, %v1598
      %1728 = vst.msk [vmem:[%s257 + $0x3e0] sm:$0xff] %vm1603, %v1599
      %1729 = vst.msk [vmem:[%s257 + $0x3e8] sm:$0xff] %vm1603, %v1600
      %1730 = vst.msk [vmem:[%s257 + $0x3f0] sm:$0xff] %vm1603, %v1601
      %1731 = vst.msk [vmem:[%s257 + $0x3f8] sm:$0xff] %vm1603, %v1602
      %s1732 = smul.u32 128, %s19
      %p1733 = scmp.lt.s32.totalorder %s1732, 3455
      %s1734 = scalar_select %p1733, %s1732, 3455
      %p1735 = scmp.lt.s32.totalorder %s20, 0
      %s1736 = scalar_select %p1735, %s20, 0
      %s1737 = sadd.s32 %s1736, %s1734
      %s1738 = smul.addr %s1737, 8
      %s1739 = scalar_lea.vmem %s3, %s1738
      // Predicated region
      $region33: #{tpu_custom_call.1} parent=31 // pred_check
        %p1740 = pneg %p135
      $region34: #{tpu_custom_call.1} parent=31 // pred_check_branch
        %1742 = sbr.rel (%p1740) target = $region36
      $region35: #{tpu_custom_call.1} parent=31 // pred_region
        %s1743 = smul.u32 128, %s19
      $region36: #{tpu_custom_call.1} parent=31 // pred_fallthru
        _
    $region32: #{tpu_custom_call.1} parent=5 // pred_fallthru
      _
    %p1744 = scmp.le.s32.totalorder 2, %s9
    // Predicated region
    $region37: #{tpu_custom_call.1} parent=5 // pred_check
      %p1745 = pneg %p1744
    $region38: #{tpu_custom_call.1} parent=5 // pred_check_branch
      %1747 = sbr.rel (%p1745) target = $region40
    $region39: #{tpu_custom_call.1} parent=5 // pred_region
      %s1748 = ssub.s32 %s9, 2
      // Predicated region
      $region41: #{tpu_custom_call.1} parent=39 // pred_check
        %p1749 = pneg %p141
      $region42: #{tpu_custom_call.1} parent=39 // pred_check_branch
        %1751 = sbr.rel (%p1749) target = $region44
      $region43: #{tpu_custom_call.1} parent=39 // pred_region
        %s1752 = smul.u32 128, %s22
        %p1753 = scmp.lt.s32.totalorder %s1752, 3455
        %s1754 = scalar_select %p1753, %s1752, 3455
        %p1755 = scmp.lt.s32.totalorder %s23, 0
        %s1756 = scalar_select %p1755, %s23, 0
        %s1757 = sadd.s32 %s1756, %s1754
        %s1758 = smul.addr %s1757, 8
        %s1759 = scalar_lea.vmem %s3, %s1758
      $region44: #{tpu_custom_call.1} parent=39 // pred_fallthru
        _
    $region40: #{tpu_custom_call.1} parent=5 // pred_fallthru
      _
  $region6: #{tpu_custom_call.1} parent=0 // loop_footer
    %s13 = sadd.s32 1, %s9
  $region7: #{tpu_custom_call.1} parent=0 // loop_footer_branch
    %8 = sbr.rel target = $region3
  $region8: #{tpu_custom_call.1} parent=0 // loop_exit
    _

</llo_original>
